<compile_context>
chip_gen: v6e
topology: v6e:2x2x1
jax: 0.10.0
libtpu: 0.0.40
codegen_flags: <defaults>
</compile_context>

<pallas_src>
import jax
import jax.numpy as jnp
import numpy as np
from jax.experimental import pallas as pl
from jax.experimental.pallas import tpu as pltpu


def rnn_kernel(x_ref, w_ref, fc_ref, out_ref, proj_a, proj_b):
    """All refs live in VMEM (whole-array blocks, no grid).

    x_ref  : (seq*BP, hidden)       time-major, batch-padded to BP rows/step,
                                    feature-padded to hidden, rows flattened
    w_ref  : (layers, 2*hidden+1, hidden)
             rows [0:H]      = Wih_l   (layer-0 rows beyond feat are zero)
             rows [H:2H]     = Whh_l
             row  [2H]       = b_ih_l + b_hh_l
    fc_ref : (hidden+1, out_dim)    rows [0:H] = fc weight, row [H] = fc bias
    out_ref: (BP, out_dim)
    proj_a, proj_b : VMEM scratch (seq*BP, hidden) -- ping-pong buffers holding a
             layer's hoisted input-to-hidden projection (+ bias) for every step.
    """
    num_layers = w_ref.shape[0]
    hidden = x_ref.shape[1]
    bp = out_ref.shape[0]                      # padded batch rows (multiple of 8)
    seq_len = x_ref.shape[0] // bp
    bufs = [proj_a, proj_b]

    # Layer-0 input projection + bias for the whole sequence: one MXU matmul,
    # entirely off the serial h-dependency chain.
    w_l = w_ref[0]                             # (2H+1, H) slab of layer 0
    proj_a[...] = (
        jnp.dot(x_ref[...], w_l[0:hidden, :], preferred_element_type=jnp.float32)
        + w_l[2 * hidden:2 * hidden + 1, :])

    h = jnp.zeros((bp, hidden), jnp.float32)
    for l in range(num_layers):                # static unroll over layers
        last_layer = (l == num_layers - 1)
        whh = w_l[hidden:2 * hidden, :]        # (H, H)
        if not last_layer:
            w_n = w_ref[l + 1]                 # next layer's slab
            wih_n = w_n[0:hidden, :]
            b_n = w_n[2 * hidden:2 * hidden + 1, :]
        cur = bufs[l % 2]                      # this layer's projections (read)
        nxt = bufs[(l + 1) % 2]                # next layer's projections (write)

        # t = 0: previous hidden state is all zeros -> skip the h @ Whh matmul.
        h = jnp.maximum(cur[0:bp, :], 0.0)
        if not last_layer:
            nxt[0:bp, :] = (
                jnp.dot(h, wih_n, preferred_element_type=jnp.float32) + b_n)

        for t in range(1, seq_len):            # fully unrolled time recurrence
            pre = cur[t * bp:(t + 1) * bp, :] + jnp.dot(
                h, whh, preferred_element_type=jnp.float32)
            h = jnp.maximum(pre, 0.0)          # relu nonlinearity
            if not last_layer:
                # Interleaved next-layer projection: off the h chain, fills MXU
                # bubbles; exactly one VMEM store per step (v5e single vst slot).
                nxt[t * bp:(t + 1) * bp, :] = (
                    jnp.dot(h, wih_n, preferred_element_type=jnp.float32) + b_n)

        if not last_layer:
            w_l = w_n                          # reuse the already-loaded slab

    # fc on the last time step of the last layer (masked store: out_dim < 128;
    # accepted -- it is a single store).
    fc = fc_ref[...]                           # (H+1, out_dim)
    out_ref[...] = (
        jnp.dot(h, fc[0:hidden, :], preferred_element_type=jnp.float32)
        + fc[hidden:hidden + 1, :])


def rnn_forward(x, wih, whh, b, fcw, fcb):
    """x: (batch, seq, feat). Returns (batch, out_dim)."""
    batch, seq, feat = x.shape
    layers, hidden, _ = wih.shape
    out_dim = fcw.shape[1]
    bp = ((batch + 7) // 8) * 8                # sublane-pad batch to a multiple of 8

    # batch-first -> time-major, zero-pad feature dim to hidden and batch to bp,
    # flatten (seq, bp) -> rows so the layer-0 projection is one 2-D matmul.
    x_tm = jnp.transpose(x, (1, 0, 2))                                   # (seq, batch, feat)
    x_tm = jnp.pad(x_tm, ((0, 0), (0, bp - batch), (0, hidden - feat)))  # (seq, bp, hidden)
    x2d = x_tm.reshape(seq * bp, hidden)                                 # (seq*bp, hidden)

    # Pack weights to cut kernel-entry DMAs from 6 to 3.
    w_packed = jnp.concatenate([wih, whh, b], axis=1)    # (L, 2H+1, H)
    fc_packed = jnp.concatenate([fcw, fcb], axis=0)      # (H+1, out_dim)

    vmem = pl.BlockSpec(memory_space=pltpu.MemorySpace.VMEM)
    out_padded = pl.pallas_call(
        rnn_kernel,
        out_shape=jax.ShapeDtypeStruct((bp, out_dim), jnp.float32),
        in_specs=[vmem, vmem, vmem],
        out_specs=vmem,
        scratch_shapes=[
            pltpu.VMEM((seq * bp, hidden), jnp.float32),
            pltpu.VMEM((seq * bp, hidden), jnp.float32),
        ],
    )(x2d, w_packed, fc_packed)
    return out_padded[:batch]                  # drop padded batch rows


def rnn_reference(x, wih, whh, b, fcw, fcb):
    """Pure-JAX reference matching nn.RNN(relu) + Linear semantics."""
    batch, seq, feat = x.shape
    layers, hidden, _ = wih.shape
    x_tm = jnp.transpose(x, (1, 0, 2))
    x_tm = jnp.pad(x_tm, ((0, 0), (0, 0), (0, hidden - feat)))
    seq_out = x_tm
    h_last = None
    for l in range(layers):
        h = jnp.zeros((batch, hidden), jnp.float32)
        outs = []
        for t in range(seq):
            h = jnp.maximum(seq_out[t] @ wih[l] + h @ whh[l] + b[l], 0.0)
            outs.append(h)
        seq_out = jnp.stack(outs, axis=0)
        h_last = h
    return h_last @ fcw + fcb


if __name__ == "__main__":
    # Small shapes implied by the module: nn.RNN(2, hidden, layers, batch_first=True)
    batch, seq, feat = 2, 8, 2
    hidden, layers, out_dim = 32, 2, 4

    key = jax.random.PRNGKey(0)
    k_x, k_wih0, k_wih, k_whh, k_b, k_fcw, k_fcb = jax.random.split(key, 7)
    bound = 1.0 / np.sqrt(hidden)

    x = jax.random.normal(k_x, (batch, seq, feat), jnp.float32)

    # Layer 0 input-to-hidden weight is (feat, hidden); zero-pad rows to (hidden, hidden).
    wih0 = jax.random.uniform(k_wih0, (feat, hidden), jnp.float32, -bound, bound)
    wih0 = jnp.pad(wih0, ((0, hidden - feat), (0, 0)))
    wih_rest = jax.random.uniform(k_wih, (layers - 1, hidden, hidden), jnp.float32,
                                  -bound, bound) if layers > 1 else \
        jnp.zeros((0, hidden, hidden), jnp.float32)
    wih = jnp.concatenate([wih0[None], wih_rest], axis=0)            # (L, H, H)
    whh = jax.random.uniform(k_whh, (layers, hidden, hidden), jnp.float32,
                             -bound, bound)                          # (L, H, H)
    # combined bias b_ih + b_hh, kept as a single tensor
    b = jax.random.uniform(k_b, (layers, 1, hidden), jnp.float32, -bound, bound)
    fcw = jax.random.uniform(k_fcw, (hidden, out_dim), jnp.float32, -bound, bound)
    fcb = jax.random.uniform(k_fcb, (1, out_dim), jnp.float32, -bound, bound)

    out = jax.block_until_ready(rnn_forward(x, wih, whh, b, fcw, fcb))
    ref = jax.block_until_ready(rnn_reference(x, wih, whh, b, fcw, fcb))

    assert out.shape == (batch, out_dim), out.shape
    np.testing.assert_allclose(np.asarray(out), np.asarray(ref), rtol=1e-5, atol=1e-5)
    print("KERNEL_OK")
</pallas_src>

<mosaic_0001>
module attributes {stable_mosaic.version = 11 : i64} {
  func.func @rnn_kernel(%arg0: memref<64x32xf32, #tpu.memory_space<vmem>>, %arg1: memref<2x65x32xf32, #tpu.memory_space<vmem>>, %arg2: memref<33x4xf32, #tpu.memory_space<vmem>>, %arg3: memref<8x4xf32, #tpu.memory_space<vmem>>, %arg4: memref<64x32xf32, #tpu.memory_space<vmem>>, %arg5: memref<64x32xf32, #tpu.memory_space<vmem>>) attributes {dimension_semantics = [], scalar_prefetch = 0 : i64, scratch_operands = 2 : i64, tpu.core_type = #tpu.core_type<tc>} {
    %c0 = arith.constant 0 : index
    %c0_0 = arith.constant 0 : index
    %c0_1 = arith.constant 0 : index
    %0 = vector.load %arg1[%c0, %c0_0, %c0_1] : memref<2x65x32xf32, #tpu.memory_space<vmem>>, vector<1x65x32xf32>
    %1 = vector.shape_cast %0 : vector<1x65x32xf32> to vector<65x32xf32>
    %c0_2 = arith.constant 0 : index
    %c0_3 = arith.constant 0 : index
    %2 = vector.load %arg0[%c0_2, %c0_3] : memref<64x32xf32, #tpu.memory_space<vmem>>, vector<64x32xf32>
    %3 = vector.extract_strided_slice %1 {offsets = [0, 0], sizes = [32, 32], strides = [1, 1]} : vector<65x32xf32> to vector<32x32xf32>
    %cst = arith.constant dense<0.000000e+00> : vector<64x32xf32>
    %4 = tpu.matmul %2, %3, %cst {dimension_numbers = #tpu.dot_dimension_numbers<[1], [0], [0], [1], [0, 0, 1, 1], [], []>} : vector<64x32xf32>, vector<32x32xf32>, vector<64x32xf32> -> vector<64x32xf32>
    %5 = vector.extract_strided_slice %1 {offsets = [64, 0], sizes = [1, 32], strides = [1, 1]} : vector<65x32xf32> to vector<1x32xf32>
    %6 = vector.broadcast %5 : vector<1x32xf32> to vector<64x32xf32>
    %7 = arith.addf %4, %6 : vector<64x32xf32>
    %c0_4 = arith.constant 0 : index
    %c0_5 = arith.constant 0 : index
    %8 = vector.load %arg4[%c0_4, %c0_5] : memref<64x32xf32, #tpu.memory_space<vmem>>, vector<64x32xf32>
    tpu.vector_store %arg4[%c0_4, %c0_5], %7 {strides = array<i32>} : memref<64x32xf32, #tpu.memory_space<vmem>>, vector<64x32xf32>,
    %9 = vector.extract_strided_slice %1 {offsets = [32, 0], sizes = [32, 32], strides = [1, 1]} : vector<65x32xf32> to vector<32x32xf32>
    %c1 = arith.constant 1 : index
    %c0_6 = arith.constant 0 : index
    %c0_7 = arith.constant 0 : index
    %10 = vector.load %arg1[%c1, %c0_6, %c0_7] : memref<2x65x32xf32, #tpu.memory_space<vmem>>, vector<1x65x32xf32>
    %11 = vector.shape_cast %10 : vector<1x65x32xf32> to vector<65x32xf32>
    %12 = vector.extract_strided_slice %11 {offsets = [0, 0], sizes = [32, 32], strides = [1, 1]} : vector<65x32xf32> to vector<32x32xf32>
    %13 = vector.extract_strided_slice %11 {offsets = [64, 0], sizes = [1, 32], strides = [1, 1]} : vector<65x32xf32> to vector<1x32xf32>
    %c0_8 = arith.constant 0 : index
    %c0_9 = arith.constant 0 : index
    %14 = vector.load %arg4[%c0_8, %c0_9] : memref<64x32xf32, #tpu.memory_space<vmem>>, vector<8x32xf32>
    %cst_10 = arith.constant 0.000000e+00 : f32
    %15 = vector.broadcast %cst_10 : f32 to vector<8x32xf32>
    %16 = arith.maximumf %14, %15 : vector<8x32xf32>
    %cst_11 = arith.constant dense<0.000000e+00> : vector<8x32xf32>
    %17 = tpu.matmul %16, %12, %cst_11 {dimension_numbers = #tpu.dot_dimension_numbers<[1], [0], [0], [1], [0, 0, 1, 1], [], []>} : vector<8x32xf32>, vector<32x32xf32>, vector<8x32xf32> -> vector<8x32xf32>
    %18 = vector.broadcast %13 : vector<1x32xf32> to vector<8x32xf32>
    %19 = arith.addf %17, %18 : vector<8x32xf32>
    %c0_12 = arith.constant 0 : index
    %c0_13 = arith.constant 0 : index
    %20 = vector.load %arg5[%c0_12, %c0_13] : memref<64x32xf32, #tpu.memory_space<vmem>>, vector<8x32xf32>
    tpu.vector_store %arg5[%c0_12, %c0_13], %19 {strides = array<i32>} : memref<64x32xf32, #tpu.memory_space<vmem>>, vector<8x32xf32>,
    %c8 = arith.constant 8 : index
    %c0_14 = arith.constant 0 : index
    %21 = vector.load %arg4[%c8, %c0_14] : memref<64x32xf32, #tpu.memory_space<vmem>>, vector<8x32xf32>
    %cst_15 = arith.constant dense<0.000000e+00> : vector<8x32xf32>
    %22 = tpu.matmul %16, %9, %cst_15 {dimension_numbers = #tpu.dot_dimension_numbers<[1], [0], [0], [1], [0, 0, 1, 1], [], []>} : vector<8x32xf32>, vector<32x32xf32>, vector<8x32xf32> -> vector<8x32xf32>
    %23 = arith.addf %21, %22 : vector<8x32xf32>
    %cst_16 = arith.constant 0.000000e+00 : f32
    %24 = vector.broadcast %cst_16 : f32 to vector<8x32xf32>
    %25 = arith.maximumf %23, %24 : vector<8x32xf32>
    %cst_17 = arith.constant dense<0.000000e+00> : vector<8x32xf32>
    %26 = tpu.matmul %25, %12, %cst_17 {dimension_numbers = #tpu.dot_dimension_numbers<[1], [0], [0], [1], [0, 0, 1, 1], [], []>} : vector<8x32xf32>, vector<32x32xf32>, vector<8x32xf32> -> vector<8x32xf32>
    %27 = vector.broadcast %13 : vector<1x32xf32> to vector<8x32xf32>
    %28 = arith.addf %26, %27 : vector<8x32xf32>
    %c8_18 = arith.constant 8 : index
    %c0_19 = arith.constant 0 : index
    %29 = vector.load %arg5[%c8_18, %c0_19] : memref<64x32xf32, #tpu.memory_space<vmem>>, vector<8x32xf32>
    tpu.vector_store %arg5[%c8_18, %c0_19], %28 {strides = array<i32>} : memref<64x32xf32, #tpu.memory_space<vmem>>, vector<8x32xf32>,
    %c16 = arith.constant 16 : index
    %c0_20 = arith.constant 0 : index
    %30 = vector.load %arg4[%c16, %c0_20] : memref<64x32xf32, #tpu.memory_space<vmem>>, vector<8x32xf32>
    %cst_21 = arith.constant dense<0.000000e+00> : vector<8x32xf32>
    %31 = tpu.matmul %25, %9, %cst_21 {dimension_numbers = #tpu.dot_dimension_numbers<[1], [0], [0], [1], [0, 0, 1, 1], [], []>} : vector<8x32xf32>, vector<32x32xf32>, vector<8x32xf32> -> vector<8x32xf32>
    %32 = arith.addf %30, %31 : vector<8x32xf32>
    %cst_22 = arith.constant 0.000000e+00 : f32
    %33 = vector.broadcast %cst_22 : f32 to vector<8x32xf32>
    %34 = arith.maximumf %32, %33 : vector<8x32xf32>
    %cst_23 = arith.constant dense<0.000000e+00> : vector<8x32xf32>
    %35 = tpu.matmul %34, %12, %cst_23 {dimension_numbers = #tpu.dot_dimension_numbers<[1], [0], [0], [1], [0, 0, 1, 1], [], []>} : vector<8x32xf32>, vector<32x32xf32>, vector<8x32xf32> -> vector<8x32xf32>
    %36 = vector.broadcast %13 : vector<1x32xf32> to vector<8x32xf32>
    %37 = arith.addf %35, %36 : vector<8x32xf32>
    %c16_24 = arith.constant 16 : index
    %c0_25 = arith.constant 0 : index
    %38 = vector.load %arg5[%c16_24, %c0_25] : memref<64x32xf32, #tpu.memory_space<vmem>>, vector<8x32xf32>
    tpu.vector_store %arg5[%c16_24, %c0_25], %37 {strides = array<i32>} : memref<64x32xf32, #tpu.memory_space<vmem>>, vector<8x32xf32>,
    %c24 = arith.constant 24 : index
    %c0_26 = arith.constant 0 : index
    %39 = vector.load %arg4[%c24, %c0_26] : memref<64x32xf32, #tpu.memory_space<vmem>>, vector<8x32xf32>
    %cst_27 = arith.constant dense<0.000000e+00> : vector<8x32xf32>
    %40 = tpu.matmul %34, %9, %cst_27 {dimension_numbers = #tpu.dot_dimension_numbers<[1], [0], [0], [1], [0, 0, 1, 1], [], []>} : vector<8x32xf32>, vector<32x32xf32>, vector<8x32xf32> -> vector<8x32xf32>
    %41 = arith.addf %39, %40 : vector<8x32xf32>
    %cst_28 = arith.constant 0.000000e+00 : f32
    %42 = vector.broadcast %cst_28 : f32 to vector<8x32xf32>
    %43 = arith.maximumf %41, %42 : vector<8x32xf32>
    %cst_29 = arith.constant dense<0.000000e+00> : vector<8x32xf32>
    %44 = tpu.matmul %43, %12, %cst_29 {dimension_numbers = #tpu.dot_dimension_numbers<[1], [0], [0], [1], [0, 0, 1, 1], [], []>} : vector<8x32xf32>, vector<32x32xf32>, vector<8x32xf32> -> vector<8x32xf32>
    %45 = vector.broadcast %13 : vector<1x32xf32> to vector<8x32xf32>
    %46 = arith.addf %44, %45 : vector<8x32xf32>
    %c24_30 = arith.constant 24 : index
    %c0_31 = arith.constant 0 : index
    %47 = vector.load %arg5[%c24_30, %c0_31] : memref<64x32xf32, #tpu.memory_space<vmem>>, vector<8x32xf32>
    tpu.vector_store %arg5[%c24_30, %c0_31], %46 {strides = array<i32>} : memref<64x32xf32, #tpu.memory_space<vmem>>, vector<8x32xf32>,
    %c32 = arith.constant 32 : index
    %c0_32 = arith.constant 0 : index
    %48 = vector.load %arg4[%c32, %c0_32] : memref<64x32xf32, #tpu.memory_space<vmem>>, vector<8x32xf32>
    %cst_33 = arith.constant dense<0.000000e+00> : vector<8x32xf32>
    %49 = tpu.matmul %43, %9, %cst_33 {dimension_numbers = #tpu.dot_dimension_numbers<[1], [0], [0], [1], [0, 0, 1, 1], [], []>} : vector<8x32xf32>, vector<32x32xf32>, vector<8x32xf32> -> vector<8x32xf32>
    %50 = arith.addf %48, %49 : vector<8x32xf32>
    %cst_34 = arith.constant 0.000000e+00 : f32
    %51 = vector.broadcast %cst_34 : f32 to vector<8x32xf32>
    %52 = arith.maximumf %50, %51 : vector<8x32xf32>
    %cst_35 = arith.constant dense<0.000000e+00> : vector<8x32xf32>
    %53 = tpu.matmul %52, %12, %cst_35 {dimension_numbers = #tpu.dot_dimension_numbers<[1], [0], [0], [1], [0, 0, 1, 1], [], []>} : vector<8x32xf32>, vector<32x32xf32>, vector<8x32xf32> -> vector<8x32xf32>
    %54 = vector.broadcast %13 : vector<1x32xf32> to vector<8x32xf32>
    %55 = arith.addf %53, %54 : vector<8x32xf32>
    %c32_36 = arith.constant 32 : index
    %c0_37 = arith.constant 0 : index
    %56 = vector.load %arg5[%c32_36, %c0_37] : memref<64x32xf32, #tpu.memory_space<vmem>>, vector<8x32xf32>
    tpu.vector_store %arg5[%c32_36, %c0_37], %55 {strides = array<i32>} : memref<64x32xf32, #tpu.memory_space<vmem>>, vector<8x32xf32>,
    %c40 = arith.constant 40 : index
    %c0_38 = arith.constant 0 : index
    %57 = vector.load %arg4[%c40, %c0_38] : memref<64x32xf32, #tpu.memory_space<vmem>>, vector<8x32xf32>
    %cst_39 = arith.constant dense<0.000000e+00> : vector<8x32xf32>
    %58 = tpu.matmul %52, %9, %cst_39 {dimension_numbers = #tpu.dot_dimension_numbers<[1], [0], [0], [1], [0, 0, 1, 1], [], []>} : vector<8x32xf32>, vector<32x32xf32>, vector<8x32xf32> -> vector<8x32xf32>
    %59 = arith.addf %57, %58 : vector<8x32xf32>
    %cst_40 = arith.constant 0.000000e+00 : f32
    %60 = vector.broadcast %cst_40 : f32 to vector<8x32xf32>
    %61 = arith.maximumf %59, %60 : vector<8x32xf32>
    %cst_41 = arith.constant dense<0.000000e+00> : vector<8x32xf32>
    %62 = tpu.matmul %61, %12, %cst_41 {dimension_numbers = #tpu.dot_dimension_numbers<[1], [0], [0], [1], [0, 0, 1, 1], [], []>} : vector<8x32xf32>, vector<32x32xf32>, vector<8x32xf32> -> vector<8x32xf32>
    %63 = vector.broadcast %13 : vector<1x32xf32> to vector<8x32xf32>
    %64 = arith.addf %62, %63 : vector<8x32xf32>
    %c40_42 = arith.constant 40 : index
    %c0_43 = arith.constant 0 : index
    %65 = vector.load %arg5[%c40_42, %c0_43] : memref<64x32xf32, #tpu.memory_space<vmem>>, vector<8x32xf32>
    tpu.vector_store %arg5[%c40_42, %c0_43], %64 {strides = array<i32>} : memref<64x32xf32, #tpu.memory_space<vmem>>, vector<8x32xf32>,
    %c48 = arith.constant 48 : index
    %c0_44 = arith.constant 0 : index
    %66 = vector.load %arg4[%c48, %c0_44] : memref<64x32xf32, #tpu.memory_space<vmem>>, vector<8x32xf32>
    %cst_45 = arith.constant dense<0.000000e+00> : vector<8x32xf32>
    %67 = tpu.matmul %61, %9, %cst_45 {dimension_numbers = #tpu.dot_dimension_numbers<[1], [0], [0], [1], [0, 0, 1, 1], [], []>} : vector<8x32xf32>, vector<32x32xf32>, vector<8x32xf32> -> vector<8x32xf32>
    %68 = arith.addf %66, %67 : vector<8x32xf32>
    %cst_46 = arith.constant 0.000000e+00 : f32
    %69 = vector.broadcast %cst_46 : f32 to vector<8x32xf32>
    %70 = arith.maximumf %68, %69 : vector<8x32xf32>
    %cst_47 = arith.constant dense<0.000000e+00> : vector<8x32xf32>
    %71 = tpu.matmul %70, %12, %cst_47 {dimension_numbers = #tpu.dot_dimension_numbers<[1], [0], [0], [1], [0, 0, 1, 1], [], []>} : vector<8x32xf32>, vector<32x32xf32>, vector<8x32xf32> -> vector<8x32xf32>
    %72 = vector.broadcast %13 : vector<1x32xf32> to vector<8x32xf32>
    %73 = arith.addf %71, %72 : vector<8x32xf32>
    %c48_48 = arith.constant 48 : index
    %c0_49 = arith.constant 0 : index
    %74 = vector.load %arg5[%c48_48, %c0_49] : memref<64x32xf32, #tpu.memory_space<vmem>>, vector<8x32xf32>
    tpu.vector_store %arg5[%c48_48, %c0_49], %73 {strides = array<i32>} : memref<64x32xf32, #tpu.memory_space<vmem>>, vector<8x32xf32>,
    %c56 = arith.constant 56 : index
    %c0_50 = arith.constant 0 : index
    %75 = vector.load %arg4[%c56, %c0_50] : memref<64x32xf32, #tpu.memory_space<vmem>>, vector<8x32xf32>
    %cst_51 = arith.constant dense<0.000000e+00> : vector<8x32xf32>
    %76 = tpu.matmul %70, %9, %cst_51 {dimension_numbers = #tpu.dot_dimension_numbers<[1], [0], [0], [1], [0, 0, 1, 1], [], []>} : vector<8x32xf32>, vector<32x32xf32>, vector<8x32xf32> -> vector<8x32xf32>
    %77 = arith.addf %75, %76 : vector<8x32xf32>
    %cst_52 = arith.constant 0.000000e+00 : f32
    %78 = vector.broadcast %cst_52 : f32 to vector<8x32xf32>
    %79 = arith.maximumf %77, %78 : vector<8x32xf32>
    %cst_53 = arith.constant dense<0.000000e+00> : vector<8x32xf32>
    %80 = tpu.matmul %79, %12, %cst_53 {dimension_numbers = #tpu.dot_dimension_numbers<[1], [0], [0], [1], [0, 0, 1, 1], [], []>} : vector<8x32xf32>, vector<32x32xf32>, vector<8x32xf32> -> vector<8x32xf32>
    %81 = vector.broadcast %13 : vector<1x32xf32> to vector<8x32xf32>
    %82 = arith.addf %80, %81 : vector<8x32xf32>
    %c56_54 = arith.constant 56 : index
    %c0_55 = arith.constant 0 : index
    %83 = vector.load %arg5[%c56_54, %c0_55] : memref<64x32xf32, #tpu.memory_space<vmem>>, vector<8x32xf32>
    tpu.vector_store %arg5[%c56_54, %c0_55], %82 {strides = array<i32>} : memref<64x32xf32, #tpu.memory_space<vmem>>, vector<8x32xf32>,
    %84 = vector.extract_strided_slice %11 {offsets = [32, 0], sizes = [32, 32], strides = [1, 1]} : vector<65x32xf32> to vector<32x32xf32>
    %c0_56 = arith.constant 0 : index
    %c0_57 = arith.constant 0 : index
    %85 = vector.load %arg5[%c0_56, %c0_57] : memref<64x32xf32, #tpu.memory_space<vmem>>, vector<8x32xf32>
    %cst_58 = arith.constant 0.000000e+00 : f32
    %86 = vector.broadcast %cst_58 : f32 to vector<8x32xf32>
    %87 = arith.maximumf %85, %86 : vector<8x32xf32>
    %c8_59 = arith.constant 8 : index
    %c0_60 = arith.constant 0 : index
    %88 = vector.load %arg5[%c8_59, %c0_60] : memref<64x32xf32, #tpu.memory_space<vmem>>, vector<8x32xf32>
    %cst_61 = arith.constant dense<0.000000e+00> : vector<8x32xf32>
    %89 = tpu.matmul %87, %84, %cst_61 {dimension_numbers = #tpu.dot_dimension_numbers<[1], [0], [0], [1], [0, 0, 1, 1], [], []>} : vector<8x32xf32>, vector<32x32xf32>, vector<8x32xf32> -> vector<8x32xf32>
    %90 = arith.addf %88, %89 : vector<8x32xf32>
    %cst_62 = arith.constant 0.000000e+00 : f32
    %91 = vector.broadcast %cst_62 : f32 to vector<8x32xf32>
    %92 = arith.maximumf %90, %91 : vector<8x32xf32>
    %c16_63 = arith.constant 16 : index
    %c0_64 = arith.constant 0 : index
    %93 = vector.load %arg5[%c16_63, %c0_64] : memref<64x32xf32, #tpu.memory_space<vmem>>, vector<8x32xf32>
    %cst_65 = arith.constant dense<0.000000e+00> : vector<8x32xf32>
    %94 = tpu.matmul %92, %84, %cst_65 {dimension_numbers = #tpu.dot_dimension_numbers<[1], [0], [0], [1], [0, 0, 1, 1], [], []>} : vector<8x32xf32>, vector<32x32xf32>, vector<8x32xf32> -> vector<8x32xf32>
    %95 = arith.addf %93, %94 : vector<8x32xf32>
    %cst_66 = arith.constant 0.000000e+00 : f32
    %96 = vector.broadcast %cst_66 : f32 to vector<8x32xf32>
    %97 = arith.maximumf %95, %96 : vector<8x32xf32>
    %c24_67 = arith.constant 24 : index
    %c0_68 = arith.constant 0 : index
    %98 = vector.load %arg5[%c24_67, %c0_68] : memref<64x32xf32, #tpu.memory_space<vmem>>, vector<8x32xf32>
    %cst_69 = arith.constant dense<0.000000e+00> : vector<8x32xf32>
    %99 = tpu.matmul %97, %84, %cst_69 {dimension_numbers = #tpu.dot_dimension_numbers<[1], [0], [0], [1], [0, 0, 1, 1], [], []>} : vector<8x32xf32>, vector<32x32xf32>, vector<8x32xf32> -> vector<8x32xf32>
    %100 = arith.addf %98, %99 : vector<8x32xf32>
    %cst_70 = arith.constant 0.000000e+00 : f32
    %101 = vector.broadcast %cst_70 : f32 to vector<8x32xf32>
    %102 = arith.maximumf %100, %101 : vector<8x32xf32>
    %c32_71 = arith.constant 32 : index
    %c0_72 = arith.constant 0 : index
    %103 = vector.load %arg5[%c32_71, %c0_72] : memref<64x32xf32, #tpu.memory_space<vmem>>, vector<8x32xf32>
    %cst_73 = arith.constant dense<0.000000e+00> : vector<8x32xf32>
    %104 = tpu.matmul %102, %84, %cst_73 {dimension_numbers = #tpu.dot_dimension_numbers<[1], [0], [0], [1], [0, 0, 1, 1], [], []>} : vector<8x32xf32>, vector<32x32xf32>, vector<8x32xf32> -> vector<8x32xf32>
    %105 = arith.addf %103, %104 : vector<8x32xf32>
    %cst_74 = arith.constant 0.000000e+00 : f32
    %106 = vector.broadcast %cst_74 : f32 to vector<8x32xf32>
    %107 = arith.maximumf %105, %106 : vector<8x32xf32>
    %c40_75 = arith.constant 40 : index
    %c0_76 = arith.constant 0 : index
    %108 = vector.load %arg5[%c40_75, %c0_76] : memref<64x32xf32, #tpu.memory_space<vmem>>, vector<8x32xf32>
    %cst_77 = arith.constant dense<0.000000e+00> : vector<8x32xf32>
    %109 = tpu.matmul %107, %84, %cst_77 {dimension_numbers = #tpu.dot_dimension_numbers<[1], [0], [0], [1], [0, 0, 1, 1], [], []>} : vector<8x32xf32>, vector<32x32xf32>, vector<8x32xf32> -> vector<8x32xf32>
    %110 = arith.addf %108, %109 : vector<8x32xf32>
    %cst_78 = arith.constant 0.000000e+00 : f32
    %111 = vector.broadcast %cst_78 : f32 to vector<8x32xf32>
    %112 = arith.maximumf %110, %111 : vector<8x32xf32>
    %c48_79 = arith.constant 48 : index
    %c0_80 = arith.constant 0 : index
    %113 = vector.load %arg5[%c48_79, %c0_80] : memref<64x32xf32, #tpu.memory_space<vmem>>, vector<8x32xf32>
    %cst_81 = arith.constant dense<0.000000e+00> : vector<8x32xf32>
    %114 = tpu.matmul %112, %84, %cst_81 {dimension_numbers = #tpu.dot_dimension_numbers<[1], [0], [0], [1], [0, 0, 1, 1], [], []>} : vector<8x32xf32>, vector<32x32xf32>, vector<8x32xf32> -> vector<8x32xf32>
    %115 = arith.addf %113, %114 : vector<8x32xf32>
    %cst_82 = arith.constant 0.000000e+00 : f32
    %116 = vector.broadcast %cst_82 : f32 to vector<8x32xf32>
    %117 = arith.maximumf %115, %116 : vector<8x32xf32>
    %c56_83 = arith.constant 56 : index
    %c0_84 = arith.constant 0 : index
    %118 = vector.load %arg5[%c56_83, %c0_84] : memref<64x32xf32, #tpu.memory_space<vmem>>, vector<8x32xf32>
    %cst_85 = arith.constant dense<0.000000e+00> : vector<8x32xf32>
    %119 = tpu.matmul %117, %84, %cst_85 {dimension_numbers = #tpu.dot_dimension_numbers<[1], [0], [0], [1], [0, 0, 1, 1], [], []>} : vector<8x32xf32>, vector<32x32xf32>, vector<8x32xf32> -> vector<8x32xf32>
    %120 = arith.addf %118, %119 : vector<8x32xf32>
    %cst_86 = arith.constant 0.000000e+00 : f32
    %121 = vector.broadcast %cst_86 : f32 to vector<8x32xf32>
    %122 = arith.maximumf %120, %121 : vector<8x32xf32>
    %c0_87 = arith.constant 0 : index
    %c0_88 = arith.constant 0 : index
    %123 = vector.load %arg2[%c0_87, %c0_88] : memref<33x4xf32, #tpu.memory_space<vmem>>, vector<33x4xf32>
    %124 = vector.extract_strided_slice %123 {offsets = [0, 0], sizes = [32, 4], strides = [1, 1]} : vector<33x4xf32> to vector<32x4xf32>
    %cst_89 = arith.constant dense<0.000000e+00> : vector<8x4xf32>
    %125 = tpu.matmul %122, %124, %cst_89 {dimension_numbers = #tpu.dot_dimension_numbers<[1], [0], [0], [1], [0, 0, 1, 1], [], []>} : vector<8x32xf32>, vector<32x4xf32>, vector<8x4xf32> -> vector<8x4xf32>
    %126 = vector.extract_strided_slice %123 {offsets = [32, 0], sizes = [1, 4], strides = [1, 1]} : vector<33x4xf32> to vector<1x4xf32>
    %127 = vector.broadcast %126 : vector<1x4xf32> to vector<8x4xf32>
    %128 = arith.addf %125, %127 : vector<8x4xf32>
    %c0_90 = arith.constant 0 : index
    %c0_91 = arith.constant 0 : index
    %129 = vector.load %arg3[%c0_90, %c0_91] : memref<8x4xf32, #tpu.memory_space<vmem>>, vector<8x4xf32>
    tpu.vector_store %arg3[%c0_90, %c0_91], %128 {strides = array<i32>} : memref<8x4xf32, #tpu.memory_space<vmem>>, vector<8x4xf32>,
    return
  }
}

</mosaic_0001>

<llo_original>
// kernel: tpu_custom_call.1
$region0: #{tpu_custom_call.1}
  #allocation0 [shape = 'u32[]', space=smem, size = 0x4, offset = 0x4, fixed_abs, tag = 'smem constant byte address 0x4 - core index']
  #allocation1 [shape = 'u32[144,128]{1,0:T(1,128)}', space=vmem, size = 0x12000, scoped, tag = 'internal scratch']
  #allocation2 [shape = 'f32[64,32]{1,0:T(8,128)}', space=vmem, size = 0x8000, scoped, tag = 'scratch operand']
  #allocation3 [shape = 'f32[64,32]{1,0:T(8,128)}', space=vmem, size = 0x8000, scoped, tag = 'scratch operand']
  %s0 = inlined_call_operand.vmem [shape: f32[64,32], index: 0, kind: input, shape index: {}]
  %s1 = inlined_call_operand.vmem [shape: f32[2,65,32], index: 1, kind: input, shape index: {}]
  %s2 = inlined_call_operand.vmem [shape: f32[33,4], index: 2, kind: input, shape index: {}]
  %s3 = inlined_call_operand.vmem [shape: f32[8,4], index: 3, kind: output, shape index: {}]
  %s4 = sld [smem:[#allocation0]]
  $region22: #{tpu_custom_call.1} parent=0
    _
  %s6 = ssub.s32 1, %s4
  %s7 = scalar_select 0, %s6, %s4
  // Predicated region
  $region2: #{tpu_custom_call.1} parent=0 // pred_check
    _
  $region3: #{tpu_custom_call.1} parent=0 // pred_check_branch
    %9 = sbr.rel (0) target = $region5
  $region4: #{tpu_custom_call.1} parent=0 // pred_region
    _
  $region5: #{tpu_custom_call.1} parent=0 // pred_fallthru
    _
  // Predicated region
  $region6: #{tpu_custom_call.1} parent=0 // pred_check
    _
  $region7: #{tpu_custom_call.1} parent=0 // pred_check_branch
    %11 = sbr.rel (0) target = $region9
  $region8: #{tpu_custom_call.1} parent=0 // pred_region
    _
  $region9: #{tpu_custom_call.1} parent=0 // pred_fallthru
    _
  // Predicated region
  $region10: #{tpu_custom_call.1} parent=0 // pred_check
    _
  $region11: #{tpu_custom_call.1} parent=0 // pred_check_branch
    %13 = sbr.rel (0) target = $region13
  $region12: #{tpu_custom_call.1} parent=0 // pred_region
    _
  $region13: #{tpu_custom_call.1} parent=0 // pred_fallthru
    _
  %v14 = vld [vmem:[%s1] sm:$0xff]
  %v15 = vld [vmem:[%s1 + $0x8] sm:$0xff]
  %v16 = vld [vmem:[%s1 + $0x10] sm:$0xff]
  %v17 = vld [vmem:[%s1 + $0x18] sm:$0xff]
  %v18 = vld [vmem:[%s1 + $0x20] sm:$0xff]
  %v19 = vld [vmem:[%s1 + $0x28] sm:$0xff]
  %v20 = vld [vmem:[%s1 + $0x30] sm:$0xff]
  %v21 = vld [vmem:[%s1 + $0x38] sm:$0xff]
  %v22 = vld [vmem:[%s1 + $0x40] sm:$0x1]
  %v23 = vld [vmem:[%s0] sm:$0xff]
  %v24 = vld [vmem:[%s0 + $0x8] sm:$0xff]
  %v25 = vld [vmem:[%s0 + $0x10] sm:$0xff]
  %v26 = vld [vmem:[%s0 + $0x18] sm:$0xff]
  %v27 = vld [vmem:[%s0 + $0x20] sm:$0xff]
  %v28 = vld [vmem:[%s0 + $0x28] sm:$0xff]
  %v29 = vld [vmem:[%s0 + $0x30] sm:$0xff]
  %v30 = vld [vmem:[%s0 + $0x38] sm:$0xff]
  %v31 = vlaneseq
  %v32 = vshrl.u32 %v31, 7
  %v33 = vsub.s32 0, %v32
  %v34 = vrot.slane %v22, %v33
  %vm35 = vcmask 261120
  %v37 = vsel %vm35, %v23, 0
  %v40 = vsel %vm35, %v24, 0
  %v43 = vsel %vm35, %v25, 0
  %v46 = vsel %vm35, %v26, 0
  %v49 = vsel %vm35, %v27, 0
  %v52 = vsel %vm35, %v28, 0
  %v55 = vsel %vm35, %v29, 0
  %v58 = vsel %vm35, %v30, 0
  %60 = vmatprep.subr.mxu0 0.0
  %61 = vmatpush1.msra.mxu0 0.0
  %62 = vmatprep.subr.mxu0 0.0
  %63 = vmatpush1.msra.mxu0 0.0
  %64 = vmatprep.subr.mxu0 0.0
  %65 = vmatpush1.msra.mxu0 0.0
  %66 = vmatprep.subr.mxu0 0.0
  %67 = vmatpush1.msra.mxu0 0.0
  %68 = vmatprep.subr.mxu0 0.0
  %69 = vmatpush1.msra.mxu0 0.0
  %70 = vmatprep.subr.mxu0 0.0
  %71 = vmatpush1.msra.mxu0 0.0
  %72 = vmatprep.subr.mxu0 0.0
  %73 = vmatpush1.msra.mxu0 0.0
  %74 = vmatprep.subr.mxu0 0.0
  %75 = vmatpush1.msra.mxu0 0.0
  %76 = vmatprep.subr.mxu0 0.0
  %77 = vmatpush1.msra.mxu0 0.0
  %78 = vmatprep.subr.mxu0 0.0
  %79 = vmatpush1.msra.mxu0 0.0
  %80 = vmatprep.subr.mxu0 0.0
  %81 = vmatpush1.msra.mxu0 0.0
  %82 = vmatprep.subr.mxu0 0.0
  %83 = vmatpush1.msra.mxu0 0.0
  %84 = vmatprep.subr.mxu0 0.0
  %85 = vmatpush1.msra.mxu0 %v17
  %86 = vmatprep.subr.mxu0 0.0
  %87 = vmatpush1.msra.mxu0 %v16
  %88 = vmatprep.subr.mxu0 0.0
  %89 = vmatpush1.msra.mxu0 %v15
  %90 = vmatprep.subr.mxu0 0.0
  %91 = vmatpush1.msra.mxu0 %v14
  %92 = vmatprep.subr.mxu0 0.0
  %93 = vmatpush2.msra.mxu0 0.0
  %94 = vmatprep.subr.mxu0 0.0
  %95 = vmatpush2.msra.mxu0 0.0
  %96 = vmatprep.subr.mxu0 0.0
  %97 = vmatpush2.msra.mxu0 0.0
  %98 = vmatprep.subr.mxu0 0.0
  %99 = vmatpush2.msra.mxu0 0.0
  %100 = vmatprep.subr.mxu0 0.0
  %101 = vmatpush2.msra.mxu0 0.0
  %102 = vmatprep.subr.mxu0 0.0
  %103 = vmatpush2.msra.mxu0 0.0
  %104 = vmatprep.subr.mxu0 0.0
  %105 = vmatpush2.msra.mxu0 0.0
  %106 = vmatprep.subr.mxu0 0.0
  %107 = vmatpush2.msra.mxu0 0.0
  %108 = vmatprep.subr.mxu0 0.0
  %109 = vmatpush2.msra.mxu0 0.0
  %110 = vmatprep.subr.mxu0 0.0
  %111 = vmatpush2.msra.mxu0 0.0
  %112 = vmatprep.subr.mxu0 0.0
  %113 = vmatpush2.msra.mxu0 0.0
  %114 = vmatprep.subr.mxu0 0.0
  %115 = vmatpush2.msra.mxu0 0.0
  %116 = vmatprep.subr.mxu0 0.0
  %117 = vmatpush2.msra.mxu0 0.0
  %118 = vmatprep.subr.mxu0 0.0
  %119 = vmatpush2.msra.mxu0 0.0
  %120 = vmatprep.subr.mxu0 0.0
  %121 = vmatpush2.msra.mxu0 0.0
  %122 = vmatprep.subr.mxu0 0.0
  %123 = vmatpush2.msra.mxu0 0.0
  %124 = vmatprep.mubr.f32.mxu0 0.0
  %125 = vmatmul.mubr.f32.gmra.mxu0 %v37
  %v126 = vpop.f32.mrf.mxu0
  %v127 = vadd.f32 %v34, %v126
  %v128 = vpop.f32.mrf.mxu0
  %129 = vmatprep.mubr.f32.mxu0 0.0
  %130 = vmatmul.mubr.f32.gmra.mxu0 %v40
  %v131 = vpop.f32.mrf.mxu0
  %v132 = vadd.f32 %v34, %v131
  %v133 = vpop.f32.mrf.mxu0
  %134 = vmatprep.mubr.f32.mxu0 0.0
  %135 = vmatmul.mubr.f32.gmra.mxu0 %v43
  %v136 = vpop.f32.mrf.mxu0
  %v137 = vadd.f32 %v34, %v136
  %v138 = vpop.f32.mrf.mxu0
  %139 = vmatprep.mubr.f32.mxu0 0.0
  %140 = vmatmul.mubr.f32.gmra.mxu0 %v46
  %v141 = vpop.f32.mrf.mxu0
  %v142 = vadd.f32 %v34, %v141
  %v143 = vpop.f32.mrf.mxu0
  %144 = vmatprep.mubr.f32.mxu0 0.0
  %145 = vmatmul.mubr.f32.gmra.mxu0 %v49
  %v146 = vpop.f32.mrf.mxu0
  %v147 = vadd.f32 %v34, %v146
  %v148 = vpop.f32.mrf.mxu0
  %149 = vmatprep.mubr.f32.mxu0 0.0
  %150 = vmatmul.mubr.f32.gmra.mxu0 %v52
  %v151 = vpop.f32.mrf.mxu0
  %v152 = vadd.f32 %v34, %v151
  %v153 = vpop.f32.mrf.mxu0
  %154 = vmatprep.mubr.f32.mxu0 0.0
  %155 = vmatmul.mubr.f32.gmra.mxu0 %v55
  %v156 = vpop.f32.mrf.mxu0
  %v157 = vadd.f32 %v34, %v156
  %v158 = vpop.f32.mrf.mxu0
  %159 = vmatprep.mubr.f32.mxu0 0.0
  %160 = vmatmul.mubr.f32.gmra.mxu0 %v58
  %v161 = vpop.f32.mrf.mxu0
  %v162 = vadd.f32 %v34, %v161
  %v163 = vpop.f32.mrf.mxu0
  %164 = vdwg.mxu0
  %165 = vst.msk [vmem:[#allocation2] sm:$0xff] %vm35, %v127
  %166 = vst.msk [vmem:[#allocation2 + $0x8] sm:$0xff] %vm35, %v132
  %167 = vst.msk [vmem:[#allocation2 + $0x10] sm:$0xff] %vm35, %v137
  %168 = vst.msk [vmem:[#allocation2 + $0x18] sm:$0xff] %vm35, %v142
  %169 = vst.msk [vmem:[#allocation2 + $0x20] sm:$0xff] %vm35, %v147
  %170 = vst.msk [vmem:[#allocation2 + $0x28] sm:$0xff] %vm35, %v152
  %171 = vst.msk [vmem:[#allocation2 + $0x30] sm:$0xff] %vm35, %v157
  %172 = vst.msk [vmem:[#allocation2 + $0x38] sm:$0xff] %vm35, %v162
  %s173 = scalar_lea.vmem %s1, 72
  %v174 = vld [vmem:[%s173] sm:$0xff]
  %v175 = vld [vmem:[%s173 + $0x8] sm:$0xff]
  %v176 = vld [vmem:[%s173 + $0x10] sm:$0xff]
  %v177 = vld [vmem:[%s173 + $0x18] sm:$0xff]
  %v178 = vld [vmem:[%s173 + $0x20] sm:$0xff]
  %v179 = vld [vmem:[%s173 + $0x28] sm:$0xff]
  %v180 = vld [vmem:[%s173 + $0x30] sm:$0xff]
  %v181 = vld [vmem:[%s173 + $0x38] sm:$0xff]
  %v182 = vld [vmem:[%s173 + $0x40] sm:$0x1]
  %v183 = vld [vmem:[#allocation2] sm:$0xff]
  %v184 = vmax.f32 %v183, 0.0
  %v185 = vlaneseq
  %v186 = vshrl.u32 %v185, 7
  %v187 = vsub.s32 0, %v186
  %v188 = vrot.slane %v182, %v187
  %v190 = vsel %vm35, %v184, 0
  %192 = vmatprep.subr.mxu0 0.0
  %193 = vmatpush1.msra.mxu0 0.0
  %194 = vmatprep.subr.mxu0 0.0
  %195 = vmatpush1.msra.mxu0 0.0
  %196 = vmatprep.subr.mxu0 0.0
  %197 = vmatpush1.msra.mxu0 0.0
  %198 = vmatprep.subr.mxu0 0.0
  %199 = vmatpush1.msra.mxu0 0.0
  %200 = vmatprep.subr.mxu0 0.0
  %201 = vmatpush1.msra.mxu0 0.0
  %202 = vmatprep.subr.mxu0 0.0
  %203 = vmatpush1.msra.mxu0 0.0
  %204 = vmatprep.subr.mxu0 0.0
  %205 = vmatpush1.msra.mxu0 0.0
  %206 = vmatprep.subr.mxu0 0.0
  %207 = vmatpush1.msra.mxu0 0.0
  %208 = vmatprep.subr.mxu0 0.0
  %209 = vmatpush1.msra.mxu0 0.0
  %210 = vmatprep.subr.mxu0 0.0
  %211 = vmatpush1.msra.mxu0 0.0
  %212 = vmatprep.subr.mxu0 0.0
  %213 = vmatpush1.msra.mxu0 0.0
  %214 = vmatprep.subr.mxu0 0.0
  %215 = vmatpush1.msra.mxu0 0.0
  %216 = vmatprep.subr.mxu0 0.0
  %217 = vmatpush1.msra.mxu0 %v177
  %218 = vmatprep.subr.mxu0 0.0
  %219 = vmatpush1.msra.mxu0 %v176
  %220 = vmatprep.subr.mxu0 0.0
  %221 = vmatpush1.msra.mxu0 %v175
  %222 = vmatprep.subr.mxu0 0.0
  %223 = vmatpush1.msra.mxu0 %v174
  %224 = vmatprep.subr.mxu0 0.0
  %225 = vmatpush2.msra.mxu0 0.0
  %226 = vmatprep.subr.mxu0 0.0
  %227 = vmatpush2.msra.mxu0 0.0
  %228 = vmatprep.subr.mxu0 0.0
  %229 = vmatpush2.msra.mxu0 0.0
  %230 = vmatprep.subr.mxu0 0.0
  %231 = vmatpush2.msra.mxu0 0.0
  %232 = vmatprep.subr.mxu0 0.0
  %233 = vmatpush2.msra.mxu0 0.0
  %234 = vmatprep.subr.mxu0 0.0
  %235 = vmatpush2.msra.mxu0 0.0
  %236 = vmatprep.subr.mxu0 0.0
  %237 = vmatpush2.msra.mxu0 0.0
  %238 = vmatprep.subr.mxu0 0.0
  %239 = vmatpush2.msra.mxu0 0.0
  %240 = vmatprep.subr.mxu0 0.0
  %241 = vmatpush2.msra.mxu0 0.0
  %242 = vmatprep.subr.mxu0 0.0
  %243 = vmatpush2.msra.mxu0 0.0
  %244 = vmatprep.subr.mxu0 0.0
  %245 = vmatpush2.msra.mxu0 0.0
  %246 = vmatprep.subr.mxu0 0.0
  %247 = vmatpush2.msra.mxu0 0.0
  %248 = vmatprep.subr.mxu0 0.0
  %249 = vmatpush2.msra.mxu0 0.0
  %250 = vmatprep.subr.mxu0 0.0
  %251 = vmatpush2.msra.mxu0 0.0
  %252 = vmatprep.subr.mxu0 0.0
  %253 = vmatpush2.msra.mxu0 0.0
  %254 = vmatprep.subr.mxu0 0.0
  %255 = vmatpush2.msra.mxu0 0.0
  %256 = vmatprep.mubr.f32.mxu0 0.0
  %257 = vmatmul.mubr.f32.gmra.mxu0 %v190
  %v258 = vpop.f32.mrf.mxu0
  %v259 = vadd.f32 %v188, %v258
  %v260 = vpop.f32.mrf.mxu0
  %261 = vdwg.mxu0
  %262 = vst.msk [vmem:[#allocation3] sm:$0xff] %vm35, %v259
  %v263 = vld [vmem:[#allocation2 + $0x8] sm:$0xff]
  %264 = vmatprep.subr.mxu0 0.0
  %265 = vmatpush1.msra.mxu0 0.0
  %266 = vmatprep.subr.mxu0 0.0
  %267 = vmatpush1.msra.mxu0 0.0
  %268 = vmatprep.subr.mxu0 0.0
  %269 = vmatpush1.msra.mxu0 0.0
  %270 = vmatprep.subr.mxu0 0.0
  %271 = vmatpush1.msra.mxu0 0.0
  %272 = vmatprep.subr.mxu0 0.0
  %273 = vmatpush1.msra.mxu0 0.0
  %274 = vmatprep.subr.mxu0 0.0
  %275 = vmatpush1.msra.mxu0 0.0
  %276 = vmatprep.subr.mxu0 0.0
  %277 = vmatpush1.msra.mxu0 0.0
  %278 = vmatprep.subr.mxu0 0.0
  %279 = vmatpush1.msra.mxu0 0.0
  %280 = vmatprep.subr.mxu0 0.0
  %281 = vmatpush1.msra.mxu0 0.0
  %282 = vmatprep.subr.mxu0 0.0
  %283 = vmatpush1.msra.mxu0 0.0
  %284 = vmatprep.subr.mxu0 0.0
  %285 = vmatpush1.msra.mxu0 0.0
  %286 = vmatprep.subr.mxu0 0.0
  %287 = vmatpush1.msra.mxu0 0.0
  %288 = vmatprep.subr.mxu0 0.0
  %289 = vmatpush1.msra.mxu0 %v21
  %290 = vmatprep.subr.mxu0 0.0
  %291 = vmatpush1.msra.mxu0 %v20
  %292 = vmatprep.subr.mxu0 0.0
  %293 = vmatpush1.msra.mxu0 %v19
  %294 = vmatprep.subr.mxu0 0.0
  %295 = vmatpush1.msra.mxu0 %v18
  %296 = vmatprep.subr.mxu0 0.0
  %297 = vmatpush2.msra.mxu0 0.0
  %298 = vmatprep.subr.mxu0 0.0
  %299 = vmatpush2.msra.mxu0 0.0
  %300 = vmatprep.subr.mxu0 0.0
  %301 = vmatpush2.msra.mxu0 0.0
  %302 = vmatprep.subr.mxu0 0.0
  %303 = vmatpush2.msra.mxu0 0.0
  %304 = vmatprep.subr.mxu0 0.0
  %305 = vmatpush2.msra.mxu0 0.0
  %306 = vmatprep.subr.mxu0 0.0
  %307 = vmatpush2.msra.mxu0 0.0
  %308 = vmatprep.subr.mxu0 0.0
  %309 = vmatpush2.msra.mxu0 0.0
  %310 = vmatprep.subr.mxu0 0.0
  %311 = vmatpush2.msra.mxu0 0.0
  %312 = vmatprep.subr.mxu0 0.0
  %313 = vmatpush2.msra.mxu0 0.0
  %314 = vmatprep.subr.mxu0 0.0
  %315 = vmatpush2.msra.mxu0 0.0
  %316 = vmatprep.subr.mxu0 0.0
  %317 = vmatpush2.msra.mxu0 0.0
  %318 = vmatprep.subr.mxu0 0.0
  %319 = vmatpush2.msra.mxu0 0.0
  %320 = vmatprep.subr.mxu0 0.0
  %321 = vmatpush2.msra.mxu0 0.0
  %322 = vmatprep.subr.mxu0 0.0
  %323 = vmatpush2.msra.mxu0 0.0
  %324 = vmatprep.subr.mxu0 0.0
  %325 = vmatpush2.msra.mxu0 0.0
  %326 = vmatprep.subr.mxu0 0.0
  %327 = vmatpush2.msra.mxu0 0.0
  %328 = vmatprep.mubr.f32.mxu0 0.0
  %329 = vmatmul.mubr.f32.gmra.mxu0 %v190
  %v330 = vpop.f32.mrf.mxu0
  %v331 = vadd.f32 0.0, %v330
  %v332 = vpop.f32.mrf.mxu0
  %333 = vdwg.mxu0
  %v334 = vadd.f32 %v263, %v331
  %v335 = vmax.f32 %v334, 0.0
  %v337 = vsel %vm35, %v335, 0
  %339 = vmatprep.subr.mxu0 0.0
  %340 = vmatpush1.msra.mxu0 0.0
  %341 = vmatprep.subr.mxu0 0.0
  %342 = vmatpush1.msra.mxu0 0.0
  %343 = vmatprep.subr.mxu0 0.0
  %344 = vmatpush1.msra.mxu0 0.0
  %345 = vmatprep.subr.mxu0 0.0
  %346 = vmatpush1.msra.mxu0 0.0
  %347 = vmatprep.subr.mxu0 0.0
  %348 = vmatpush1.msra.mxu0 0.0
  %349 = vmatprep.subr.mxu0 0.0
  %350 = vmatpush1.msra.mxu0 0.0
  %351 = vmatprep.subr.mxu0 0.0
  %352 = vmatpush1.msra.mxu0 0.0
  %353 = vmatprep.subr.mxu0 0.0
  %354 = vmatpush1.msra.mxu0 0.0
  %355 = vmatprep.subr.mxu0 0.0
  %356 = vmatpush1.msra.mxu0 0.0
  %357 = vmatprep.subr.mxu0 0.0
  %358 = vmatpush1.msra.mxu0 0.0
  %359 = vmatprep.subr.mxu0 0.0
  %360 = vmatpush1.msra.mxu0 0.0
  %361 = vmatprep.subr.mxu0 0.0
  %362 = vmatpush1.msra.mxu0 0.0
  %363 = vmatprep.subr.mxu0 0.0
  %364 = vmatpush1.msra.mxu0 %v177
  %365 = vmatprep.subr.mxu0 0.0
  %366 = vmatpush1.msra.mxu0 %v176
  %367 = vmatprep.subr.mxu0 0.0
  %368 = vmatpush1.msra.mxu0 %v175
  %369 = vmatprep.subr.mxu0 0.0
  %370 = vmatpush1.msra.mxu0 %v174
  %371 = vmatprep.subr.mxu0 0.0
  %372 = vmatpush2.msra.mxu0 0.0
  %373 = vmatprep.subr.mxu0 0.0
  %374 = vmatpush2.msra.mxu0 0.0
  %375 = vmatprep.subr.mxu0 0.0
  %376 = vmatpush2.msra.mxu0 0.0
  %377 = vmatprep.subr.mxu0 0.0
  %378 = vmatpush2.msra.mxu0 0.0
  %379 = vmatprep.subr.mxu0 0.0
  %380 = vmatpush2.msra.mxu0 0.0
  %381 = vmatprep.subr.mxu0 0.0
  %382 = vmatpush2.msra.mxu0 0.0
  %383 = vmatprep.subr.mxu0 0.0
  %384 = vmatpush2.msra.mxu0 0.0
  %385 = vmatprep.subr.mxu0 0.0
  %386 = vmatpush2.msra.mxu0 0.0
  %387 = vmatprep.subr.mxu0 0.0
  %388 = vmatpush2.msra.mxu0 0.0
  %389 = vmatprep.subr.mxu0 0.0
  %390 = vmatpush2.msra.mxu0 0.0
  %391 = vmatprep.subr.mxu0 0.0
  %392 = vmatpush2.msra.mxu0 0.0
  %393 = vmatprep.subr.mxu0 0.0
  %394 = vmatpush2.msra.mxu0 0.0
  %395 = vmatprep.subr.mxu0 0.0
  %396 = vmatpush2.msra.mxu0 0.0
  %397 = vmatprep.subr.mxu0 0.0
  %398 = vmatpush2.msra.mxu0 0.0
  %399 = vmatprep.subr.mxu0 0.0
  %400 = vmatpush2.msra.mxu0 0.0
  %401 = vmatprep.subr.mxu0 0.0
  %402 = vmatpush2.msra.mxu0 0.0
  %403 = vmatprep.mubr.f32.mxu0 0.0
  %404 = vmatmul.mubr.f32.gmra.mxu0 %v337
  %v405 = vpop.f32.mrf.mxu0
  %v406 = vadd.f32 %v188, %v405
  %v407 = vpop.f32.mrf.mxu0
  %408 = vdwg.mxu0
  %409 = vst.msk [vmem:[#allocation3 + $0x8] sm:$0xff] %vm35, %v406
  %v410 = vld [vmem:[#allocation2 + $0x10] sm:$0xff]
  %411 = vmatprep.subr.mxu0 0.0
  %412 = vmatpush1.msra.mxu0 0.0
  %413 = vmatprep.subr.mxu0 0.0
  %414 = vmatpush1.msra.mxu0 0.0
  %415 = vmatprep.subr.mxu0 0.0
  %416 = vmatpush1.msra.mxu0 0.0
  %417 = vmatprep.subr.mxu0 0.0
  %418 = vmatpush1.msra.mxu0 0.0
  %419 = vmatprep.subr.mxu0 0.0
  %420 = vmatpush1.msra.mxu0 0.0
  %421 = vmatprep.subr.mxu0 0.0
  %422 = vmatpush1.msra.mxu0 0.0
  %423 = vmatprep.subr.mxu0 0.0
  %424 = vmatpush1.msra.mxu0 0.0
  %425 = vmatprep.subr.mxu0 0.0
  %426 = vmatpush1.msra.mxu0 0.0
  %427 = vmatprep.subr.mxu0 0.0
  %428 = vmatpush1.msra.mxu0 0.0
  %429 = vmatprep.subr.mxu0 0.0
  %430 = vmatpush1.msra.mxu0 0.0
  %431 = vmatprep.subr.mxu0 0.0
  %432 = vmatpush1.msra.mxu0 0.0
  %433 = vmatprep.subr.mxu0 0.0
  %434 = vmatpush1.msra.mxu0 0.0
  %435 = vmatprep.subr.mxu0 0.0
  %436 = vmatpush1.msra.mxu0 %v21
  %437 = vmatprep.subr.mxu0 0.0
  %438 = vmatpush1.msra.mxu0 %v20
  %439 = vmatprep.subr.mxu0 0.0
  %440 = vmatpush1.msra.mxu0 %v19
  %441 = vmatprep.subr.mxu0 0.0
  %442 = vmatpush1.msra.mxu0 %v18
  %443 = vmatprep.subr.mxu0 0.0
  %444 = vmatpush2.msra.mxu0 0.0
  %445 = vmatprep.subr.mxu0 0.0
  %446 = vmatpush2.msra.mxu0 0.0
  %447 = vmatprep.subr.mxu0 0.0
  %448 = vmatpush2.msra.mxu0 0.0
  %449 = vmatprep.subr.mxu0 0.0
  %450 = vmatpush2.msra.mxu0 0.0
  %451 = vmatprep.subr.mxu0 0.0
  %452 = vmatpush2.msra.mxu0 0.0
  %453 = vmatprep.subr.mxu0 0.0
  %454 = vmatpush2.msra.mxu0 0.0
  %455 = vmatprep.subr.mxu0 0.0
  %456 = vmatpush2.msra.mxu0 0.0
  %457 = vmatprep.subr.mxu0 0.0
  %458 = vmatpush2.msra.mxu0 0.0
  %459 = vmatprep.subr.mxu0 0.0
  %460 = vmatpush2.msra.mxu0 0.0
  %461 = vmatprep.subr.mxu0 0.0
  %462 = vmatpush2.msra.mxu0 0.0
  %463 = vmatprep.subr.mxu0 0.0
  %464 = vmatpush2.msra.mxu0 0.0
  %465 = vmatprep.subr.mxu0 0.0
  %466 = vmatpush2.msra.mxu0 0.0
  %467 = vmatprep.subr.mxu0 0.0
  %468 = vmatpush2.msra.mxu0 0.0
  %469 = vmatprep.subr.mxu0 0.0
  %470 = vmatpush2.msra.mxu0 0.0
  %471 = vmatprep.subr.mxu0 0.0
  %472 = vmatpush2.msra.mxu0 0.0
  %473 = vmatprep.subr.mxu0 0.0
  %474 = vmatpush2.msra.mxu0 0.0
  %475 = vmatprep.mubr.f32.mxu0 0.0
  %476 = vmatmul.mubr.f32.gmra.mxu0 %v337
  %v477 = vpop.f32.mrf.mxu0
  %v478 = vadd.f32 0.0, %v477
  %v479 = vpop.f32.mrf.mxu0
  %480 = vdwg.mxu0
  %v481 = vadd.f32 %v410, %v478
  %v482 = vmax.f32 %v481, 0.0
  %v484 = vsel %vm35, %v482, 0
  %486 = vmatprep.subr.mxu0 0.0
  %487 = vmatpush1.msra.mxu0 0.0
  %488 = vmatprep.subr.mxu0 0.0
  %489 = vmatpush1.msra.mxu0 0.0
  %490 = vmatprep.subr.mxu0 0.0
  %491 = vmatpush1.msra.mxu0 0.0
  %492 = vmatprep.subr.mxu0 0.0
  %493 = vmatpush1.msra.mxu0 0.0
  %494 = vmatprep.subr.mxu0 0.0
  %495 = vmatpush1.msra.mxu0 0.0
  %496 = vmatprep.subr.mxu0 0.0
  %497 = vmatpush1.msra.mxu0 0.0
  %498 = vmatprep.subr.mxu0 0.0
  %499 = vmatpush1.msra.mxu0 0.0
  %500 = vmatprep.subr.mxu0 0.0
  %501 = vmatpush1.msra.mxu0 0.0
  %502 = vmatprep.subr.mxu0 0.0
  %503 = vmatpush1.msra.mxu0 0.0
  %504 = vmatprep.subr.mxu0 0.0
  %505 = vmatpush1.msra.mxu0 0.0
  %506 = vmatprep.subr.mxu0 0.0
  %507 = vmatpush1.msra.mxu0 0.0
  %508 = vmatprep.subr.mxu0 0.0
  %509 = vmatpush1.msra.mxu0 0.0
  %510 = vmatprep.subr.mxu0 0.0
  %511 = vmatpush1.msra.mxu0 %v177
  %512 = vmatprep.subr.mxu0 0.0
  %513 = vmatpush1.msra.mxu0 %v176
  %514 = vmatprep.subr.mxu0 0.0
  %515 = vmatpush1.msra.mxu0 %v175
  %516 = vmatprep.subr.mxu0 0.0
  %517 = vmatpush1.msra.mxu0 %v174
  %518 = vmatprep.subr.mxu0 0.0
  %519 = vmatpush2.msra.mxu0 0.0
  %520 = vmatprep.subr.mxu0 0.0
  %521 = vmatpush2.msra.mxu0 0.0
  %522 = vmatprep.subr.mxu0 0.0
  %523 = vmatpush2.msra.mxu0 0.0
  %524 = vmatprep.subr.mxu0 0.0
  %525 = vmatpush2.msra.mxu0 0.0
  %526 = vmatprep.subr.mxu0 0.0
  %527 = vmatpush2.msra.mxu0 0.0
  %528 = vmatprep.subr.mxu0 0.0
  %529 = vmatpush2.msra.mxu0 0.0
  %530 = vmatprep.subr.mxu0 0.0
  %531 = vmatpush2.msra.mxu0 0.0
  %532 = vmatprep.subr.mxu0 0.0
  %533 = vmatpush2.msra.mxu0 0.0
  %534 = vmatprep.subr.mxu0 0.0
  %535 = vmatpush2.msra.mxu0 0.0
  %536 = vmatprep.subr.mxu0 0.0
  %537 = vmatpush2.msra.mxu0 0.0
  %538 = vmatprep.subr.mxu0 0.0
  %539 = vmatpush2.msra.mxu0 0.0
  %540 = vmatprep.subr.mxu0 0.0
  %541 = vmatpush2.msra.mxu0 0.0
  %542 = vmatprep.subr.mxu0 0.0
  %543 = vmatpush2.msra.mxu0 0.0
  %544 = vmatprep.subr.mxu0 0.0
  %545 = vmatpush2.msra.mxu0 0.0
  %546 = vmatprep.subr.mxu0 0.0
  %547 = vmatpush2.msra.mxu0 0.0
  %548 = vmatprep.subr.mxu0 0.0
  %549 = vmatpush2.msra.mxu0 0.0
  %550 = vmatprep.mubr.f32.mxu0 0.0
  %551 = vmatmul.mubr.f32.gmra.mxu0 %v484
  %v552 = vpop.f32.mrf.mxu0
  %v553 = vadd.f32 %v188, %v552
  %v554 = vpop.f32.mrf.mxu0
  %555 = vdwg.mxu0
  %556 = vst.msk [vmem:[#allocation3 + $0x10] sm:$0xff] %vm35, %v553
  %v557 = vld [vmem:[#allocation2 + $0x18] sm:$0xff]
  %558 = vmatprep.subr.mxu0 0.0
  %559 = vmatpush1.msra.mxu0 0.0
  %560 = vmatprep.subr.mxu0 0.0
  %561 = vmatpush1.msra.mxu0 0.0
  %562 = vmatprep.subr.mxu0 0.0
  %563 = vmatpush1.msra.mxu0 0.0
  %564 = vmatprep.subr.mxu0 0.0
  %565 = vmatpush1.msra.mxu0 0.0
  %566 = vmatprep.subr.mxu0 0.0
  %567 = vmatpush1.msra.mxu0 0.0
  %568 = vmatprep.subr.mxu0 0.0
  %569 = vmatpush1.msra.mxu0 0.0
  %570 = vmatprep.subr.mxu0 0.0
  %571 = vmatpush1.msra.mxu0 0.0
  %572 = vmatprep.subr.mxu0 0.0
  %573 = vmatpush1.msra.mxu0 0.0
  %574 = vmatprep.subr.mxu0 0.0
  %575 = vmatpush1.msra.mxu0 0.0
  %576 = vmatprep.subr.mxu0 0.0
  %577 = vmatpush1.msra.mxu0 0.0
  %578 = vmatprep.subr.mxu0 0.0
  %579 = vmatpush1.msra.mxu0 0.0
  %580 = vmatprep.subr.mxu0 0.0
  %581 = vmatpush1.msra.mxu0 0.0
  %582 = vmatprep.subr.mxu0 0.0
  %583 = vmatpush1.msra.mxu0 %v21
  %584 = vmatprep.subr.mxu0 0.0
  %585 = vmatpush1.msra.mxu0 %v20
  %586 = vmatprep.subr.mxu0 0.0
  %587 = vmatpush1.msra.mxu0 %v19
  %588 = vmatprep.subr.mxu0 0.0
  %589 = vmatpush1.msra.mxu0 %v18
  %590 = vmatprep.subr.mxu0 0.0
  %591 = vmatpush2.msra.mxu0 0.0
  %592 = vmatprep.subr.mxu0 0.0
  %593 = vmatpush2.msra.mxu0 0.0
  %594 = vmatprep.subr.mxu0 0.0
  %595 = vmatpush2.msra.mxu0 0.0
  %596 = vmatprep.subr.mxu0 0.0
  %597 = vmatpush2.msra.mxu0 0.0
  %598 = vmatprep.subr.mxu0 0.0
  %599 = vmatpush2.msra.mxu0 0.0
  %600 = vmatprep.subr.mxu0 0.0
  %601 = vmatpush2.msra.mxu0 0.0
  %602 = vmatprep.subr.mxu0 0.0
  %603 = vmatpush2.msra.mxu0 0.0
  %604 = vmatprep.subr.mxu0 0.0
  %605 = vmatpush2.msra.mxu0 0.0
  %606 = vmatprep.subr.mxu0 0.0
  %607 = vmatpush2.msra.mxu0 0.0
  %608 = vmatprep.subr.mxu0 0.0
  %609 = vmatpush2.msra.mxu0 0.0
  %610 = vmatprep.subr.mxu0 0.0
  %611 = vmatpush2.msra.mxu0 0.0
  %612 = vmatprep.subr.mxu0 0.0
  %613 = vmatpush2.msra.mxu0 0.0
  %614 = vmatprep.subr.mxu0 0.0
  %615 = vmatpush2.msra.mxu0 0.0
  %616 = vmatprep.subr.mxu0 0.0
  %617 = vmatpush2.msra.mxu0 0.0
  %618 = vmatprep.subr.mxu0 0.0
  %619 = vmatpush2.msra.mxu0 0.0
  %620 = vmatprep.subr.mxu0 0.0
  %621 = vmatpush2.msra.mxu0 0.0
  %622 = vmatprep.mubr.f32.mxu0 0.0
  %623 = vmatmul.mubr.f32.gmra.mxu0 %v484
  %v624 = vpop.f32.mrf.mxu0
  %v625 = vadd.f32 0.0, %v624
  %v626 = vpop.f32.mrf.mxu0
  %627 = vdwg.mxu0
  %v628 = vadd.f32 %v557, %v625
  %v629 = vmax.f32 %v628, 0.0
  %v631 = vsel %vm35, %v629, 0
  %633 = vmatprep.subr.mxu0 0.0
  %634 = vmatpush1.msra.mxu0 0.0
  %635 = vmatprep.subr.mxu0 0.0
  %636 = vmatpush1.msra.mxu0 0.0
  %637 = vmatprep.subr.mxu0 0.0
  %638 = vmatpush1.msra.mxu0 0.0
  %639 = vmatprep.subr.mxu0 0.0
  %640 = vmatpush1.msra.mxu0 0.0
  %641 = vmatprep.subr.mxu0 0.0
  %642 = vmatpush1.msra.mxu0 0.0
  %643 = vmatprep.subr.mxu0 0.0
  %644 = vmatpush1.msra.mxu0 0.0
  %645 = vmatprep.subr.mxu0 0.0
  %646 = vmatpush1.msra.mxu0 0.0
  %647 = vmatprep.subr.mxu0 0.0
  %648 = vmatpush1.msra.mxu0 0.0
  %649 = vmatprep.subr.mxu0 0.0
  %650 = vmatpush1.msra.mxu0 0.0
  %651 = vmatprep.subr.mxu0 0.0
  %652 = vmatpush1.msra.mxu0 0.0
  %653 = vmatprep.subr.mxu0 0.0
  %654 = vmatpush1.msra.mxu0 0.0
  %655 = vmatprep.subr.mxu0 0.0
  %656 = vmatpush1.msra.mxu0 0.0
  %657 = vmatprep.subr.mxu0 0.0
  %658 = vmatpush1.msra.mxu0 %v177
  %659 = vmatprep.subr.mxu0 0.0
  %660 = vmatpush1.msra.mxu0 %v176
  %661 = vmatprep.subr.mxu0 0.0
  %662 = vmatpush1.msra.mxu0 %v175
  %663 = vmatprep.subr.mxu0 0.0
  %664 = vmatpush1.msra.mxu0 %v174
  %665 = vmatprep.subr.mxu0 0.0
  %666 = vmatpush2.msra.mxu0 0.0
  %667 = vmatprep.subr.mxu0 0.0
  %668 = vmatpush2.msra.mxu0 0.0
  %669 = vmatprep.subr.mxu0 0.0
  %670 = vmatpush2.msra.mxu0 0.0
  %671 = vmatprep.subr.mxu0 0.0
  %672 = vmatpush2.msra.mxu0 0.0
  %673 = vmatprep.subr.mxu0 0.0
  %674 = vmatpush2.msra.mxu0 0.0
  %675 = vmatprep.subr.mxu0 0.0
  %676 = vmatpush2.msra.mxu0 0.0
  %677 = vmatprep.subr.mxu0 0.0
  %678 = vmatpush2.msra.mxu0 0.0
  %679 = vmatprep.subr.mxu0 0.0
  %680 = vmatpush2.msra.mxu0 0.0
  %681 = vmatprep.subr.mxu0 0.0
  %682 = vmatpush2.msra.mxu0 0.0
  %683 = vmatprep.subr.mxu0 0.0
  %684 = vmatpush2.msra.mxu0 0.0
  %685 = vmatprep.subr.mxu0 0.0
  %686 = vmatpush2.msra.mxu0 0.0
  %687 = vmatprep.subr.mxu0 0.0
  %688 = vmatpush2.msra.mxu0 0.0
  %689 = vmatprep.subr.mxu0 0.0
  %690 = vmatpush2.msra.mxu0 0.0
  %691 = vmatprep.subr.mxu0 0.0
  %692 = vmatpush2.msra.mxu0 0.0
  %693 = vmatprep.subr.mxu0 0.0
  %694 = vmatpush2.msra.mxu0 0.0
  %695 = vmatprep.subr.mxu0 0.0
  %696 = vmatpush2.msra.mxu0 0.0
  %697 = vmatprep.mubr.f32.mxu0 0.0
  %698 = vmatmul.mubr.f32.gmra.mxu0 %v631
  %v699 = vpop.f32.mrf.mxu0
  %v700 = vadd.f32 %v188, %v699
  %v701 = vpop.f32.mrf.mxu0
  %702 = vdwg.mxu0
  %703 = vst.msk [vmem:[#allocation3 + $0x18] sm:$0xff] %vm35, %v700
  %v704 = vld [vmem:[#allocation2 + $0x20] sm:$0xff]
  %705 = vmatprep.subr.mxu0 0.0
  %706 = vmatpush1.msra.mxu0 0.0
  %707 = vmatprep.subr.mxu0 0.0
  %708 = vmatpush1.msra.mxu0 0.0
  %709 = vmatprep.subr.mxu0 0.0
  %710 = vmatpush1.msra.mxu0 0.0
  %711 = vmatprep.subr.mxu0 0.0
  %712 = vmatpush1.msra.mxu0 0.0
  %713 = vmatprep.subr.mxu0 0.0
  %714 = vmatpush1.msra.mxu0 0.0
  %715 = vmatprep.subr.mxu0 0.0
  %716 = vmatpush1.msra.mxu0 0.0
  %717 = vmatprep.subr.mxu0 0.0
  %718 = vmatpush1.msra.mxu0 0.0
  %719 = vmatprep.subr.mxu0 0.0
  %720 = vmatpush1.msra.mxu0 0.0
  %721 = vmatprep.subr.mxu0 0.0
  %722 = vmatpush1.msra.mxu0 0.0
  %723 = vmatprep.subr.mxu0 0.0
  %724 = vmatpush1.msra.mxu0 0.0
  %725 = vmatprep.subr.mxu0 0.0
  %726 = vmatpush1.msra.mxu0 0.0
  %727 = vmatprep.subr.mxu0 0.0
  %728 = vmatpush1.msra.mxu0 0.0
  %729 = vmatprep.subr.mxu0 0.0
  %730 = vmatpush1.msra.mxu0 %v21
  %731 = vmatprep.subr.mxu0 0.0
  %732 = vmatpush1.msra.mxu0 %v20
  %733 = vmatprep.subr.mxu0 0.0
  %734 = vmatpush1.msra.mxu0 %v19
  %735 = vmatprep.subr.mxu0 0.0
  %736 = vmatpush1.msra.mxu0 %v18
  %737 = vmatprep.subr.mxu0 0.0
  %738 = vmatpush2.msra.mxu0 0.0
  %739 = vmatprep.subr.mxu0 0.0
  %740 = vmatpush2.msra.mxu0 0.0
  %741 = vmatprep.subr.mxu0 0.0
  %742 = vmatpush2.msra.mxu0 0.0
  %743 = vmatprep.subr.mxu0 0.0
  %744 = vmatpush2.msra.mxu0 0.0
  %745 = vmatprep.subr.mxu0 0.0
  %746 = vmatpush2.msra.mxu0 0.0
  %747 = vmatprep.subr.mxu0 0.0
  %748 = vmatpush2.msra.mxu0 0.0
  %749 = vmatprep.subr.mxu0 0.0
  %750 = vmatpush2.msra.mxu0 0.0
  %751 = vmatprep.subr.mxu0 0.0
  %752 = vmatpush2.msra.mxu0 0.0
  %753 = vmatprep.subr.mxu0 0.0
  %754 = vmatpush2.msra.mxu0 0.0
  %755 = vmatprep.subr.mxu0 0.0
  %756 = vmatpush2.msra.mxu0 0.0
  %757 = vmatprep.subr.mxu0 0.0
  %758 = vmatpush2.msra.mxu0 0.0
  %759 = vmatprep.subr.mxu0 0.0
  %760 = vmatpush2.msra.mxu0 0.0
  %761 = vmatprep.subr.mxu0 0.0
  %762 = vmatpush2.msra.mxu0 0.0
  %763 = vmatprep.subr.mxu0 0.0
  %764 = vmatpush2.msra.mxu0 0.0
  %765 = vmatprep.subr.mxu0 0.0
  %766 = vmatpush2.msra.mxu0 0.0
  %767 = vmatprep.subr.mxu0 0.0
  %768 = vmatpush2.msra.mxu0 0.0
  %769 = vmatprep.mubr.f32.mxu0 0.0
  %770 = vmatmul.mubr.f32.gmra.mxu0 %v631
  %v771 = vpop.f32.mrf.mxu0
  %v772 = vadd.f32 0.0, %v771
  %v773 = vpop.f32.mrf.mxu0
  %774 = vdwg.mxu0
  %v775 = vadd.f32 %v704, %v772
  %v776 = vmax.f32 %v775, 0.0
  %v778 = vsel %vm35, %v776, 0
  %780 = vmatprep.subr.mxu0 0.0
  %781 = vmatpush1.msra.mxu0 0.0
  %782 = vmatprep.subr.mxu0 0.0
  %783 = vmatpush1.msra.mxu0 0.0
  %784 = vmatprep.subr.mxu0 0.0
  %785 = vmatpush1.msra.mxu0 0.0
  %786 = vmatprep.subr.mxu0 0.0
  %787 = vmatpush1.msra.mxu0 0.0
  %788 = vmatprep.subr.mxu0 0.0
  %789 = vmatpush1.msra.mxu0 0.0
  %790 = vmatprep.subr.mxu0 0.0
  %791 = vmatpush1.msra.mxu0 0.0
  %792 = vmatprep.subr.mxu0 0.0
  %793 = vmatpush1.msra.mxu0 0.0
  %794 = vmatprep.subr.mxu0 0.0
  %795 = vmatpush1.msra.mxu0 0.0
  %796 = vmatprep.subr.mxu0 0.0
  %797 = vmatpush1.msra.mxu0 0.0
  %798 = vmatprep.subr.mxu0 0.0
  %799 = vmatpush1.msra.mxu0 0.0
  %800 = vmatprep.subr.mxu0 0.0
  %801 = vmatpush1.msra.mxu0 0.0
  %802 = vmatprep.subr.mxu0 0.0
  %803 = vmatpush1.msra.mxu0 0.0
  %804 = vmatprep.subr.mxu0 0.0
  %805 = vmatpush1.msra.mxu0 %v177
  %806 = vmatprep.subr.mxu0 0.0
  %807 = vmatpush1.msra.mxu0 %v176
  %808 = vmatprep.subr.mxu0 0.0
  %809 = vmatpush1.msra.mxu0 %v175
  %810 = vmatprep.subr.mxu0 0.0
  %811 = vmatpush1.msra.mxu0 %v174
  %812 = vmatprep.subr.mxu0 0.0
  %813 = vmatpush2.msra.mxu0 0.0
  %814 = vmatprep.subr.mxu0 0.0
  %815 = vmatpush2.msra.mxu0 0.0
  %816 = vmatprep.subr.mxu0 0.0
  %817 = vmatpush2.msra.mxu0 0.0
  %818 = vmatprep.subr.mxu0 0.0
  %819 = vmatpush2.msra.mxu0 0.0
  %820 = vmatprep.subr.mxu0 0.0
  %821 = vmatpush2.msra.mxu0 0.0
  %822 = vmatprep.subr.mxu0 0.0
  %823 = vmatpush2.msra.mxu0 0.0
  %824 = vmatprep.subr.mxu0 0.0
  %825 = vmatpush2.msra.mxu0 0.0
  %826 = vmatprep.subr.mxu0 0.0
  %827 = vmatpush2.msra.mxu0 0.0
  %828 = vmatprep.subr.mxu0 0.0
  %829 = vmatpush2.msra.mxu0 0.0
  %830 = vmatprep.subr.mxu0 0.0
  %831 = vmatpush2.msra.mxu0 0.0
  %832 = vmatprep.subr.mxu0 0.0
  %833 = vmatpush2.msra.mxu0 0.0
  %834 = vmatprep.subr.mxu0 0.0
  %835 = vmatpush2.msra.mxu0 0.0
  %836 = vmatprep.subr.mxu0 0.0
  %837 = vmatpush2.msra.mxu0 0.0
  %838 = vmatprep.subr.mxu0 0.0
  %839 = vmatpush2.msra.mxu0 0.0
  %840 = vmatprep.subr.mxu0 0.0
  %841 = vmatpush2.msra.mxu0 0.0
  %842 = vmatprep.subr.mxu0 0.0
  %843 = vmatpush2.msra.mxu0 0.0
  %844 = vmatprep.mubr.f32.mxu0 0.0
  %845 = vmatmul.mubr.f32.gmra.mxu0 %v778
  %v846 = vpop.f32.mrf.mxu0
  %v847 = vadd.f32 %v188, %v846
  %v848 = vpop.f32.mrf.mxu0
  %849 = vdwg.mxu0
  %850 = vst.msk [vmem:[#allocation3 + $0x20] sm:$0xff] %vm35, %v847
  %v851 = vld [vmem:[#allocation2 + $0x28] sm:$0xff]
  %852 = vmatprep.subr.mxu0 0.0
  %853 = vmatpush1.msra.mxu0 0.0
  %854 = vmatprep.subr.mxu0 0.0
  %855 = vmatpush1.msra.mxu0 0.0
  %856 = vmatprep.subr.mxu0 0.0
  %857 = vmatpush1.msra.mxu0 0.0
  %858 = vmatprep.subr.mxu0 0.0
  %859 = vmatpush1.msra.mxu0 0.0
  %860 = vmatprep.subr.mxu0 0.0
  %861 = vmatpush1.msra.mxu0 0.0
  %862 = vmatprep.subr.mxu0 0.0
  %863 = vmatpush1.msra.mxu0 0.0
  %864 = vmatprep.subr.mxu0 0.0
  %865 = vmatpush1.msra.mxu0 0.0
  %866 = vmatprep.subr.mxu0 0.0
  %867 = vmatpush1.msra.mxu0 0.0
  %868 = vmatprep.subr.mxu0 0.0
  %869 = vmatpush1.msra.mxu0 0.0
  %870 = vmatprep.subr.mxu0 0.0
  %871 = vmatpush1.msra.mxu0 0.0
  %872 = vmatprep.subr.mxu0 0.0
  %873 = vmatpush1.msra.mxu0 0.0
  %874 = vmatprep.subr.mxu0 0.0
  %875 = vmatpush1.msra.mxu0 0.0
  %876 = vmatprep.subr.mxu0 0.0
  %877 = vmatpush1.msra.mxu0 %v21
  %878 = vmatprep.subr.mxu0 0.0
  %879 = vmatpush1.msra.mxu0 %v20
  %880 = vmatprep.subr.mxu0 0.0
  %881 = vmatpush1.msra.mxu0 %v19
  %882 = vmatprep.subr.mxu0 0.0
  %883 = vmatpush1.msra.mxu0 %v18
  %884 = vmatprep.subr.mxu0 0.0
  %885 = vmatpush2.msra.mxu0 0.0
  %886 = vmatprep.subr.mxu0 0.0
  %887 = vmatpush2.msra.mxu0 0.0
  %888 = vmatprep.subr.mxu0 0.0
  %889 = vmatpush2.msra.mxu0 0.0
  %890 = vmatprep.subr.mxu0 0.0
  %891 = vmatpush2.msra.mxu0 0.0
  %892 = vmatprep.subr.mxu0 0.0
  %893 = vmatpush2.msra.mxu0 0.0
  %894 = vmatprep.subr.mxu0 0.0
  %895 = vmatpush2.msra.mxu0 0.0
  %896 = vmatprep.subr.mxu0 0.0
  %897 = vmatpush2.msra.mxu0 0.0
  %898 = vmatprep.subr.mxu0 0.0
  %899 = vmatpush2.msra.mxu0 0.0
  %900 = vmatprep.subr.mxu0 0.0
  %901 = vmatpush2.msra.mxu0 0.0
  %902 = vmatprep.subr.mxu0 0.0
  %903 = vmatpush2.msra.mxu0 0.0
  %904 = vmatprep.subr.mxu0 0.0
  %905 = vmatpush2.msra.mxu0 0.0
  %906 = vmatprep.subr.mxu0 0.0
  %907 = vmatpush2.msra.mxu0 0.0
  %908 = vmatprep.subr.mxu0 0.0
  %909 = vmatpush2.msra.mxu0 0.0
  %910 = vmatprep.subr.mxu0 0.0
  %911 = vmatpush2.msra.mxu0 0.0
  %912 = vmatprep.subr.mxu0 0.0
  %913 = vmatpush2.msra.mxu0 0.0
  %914 = vmatprep.subr.mxu0 0.0
  %915 = vmatpush2.msra.mxu0 0.0
  %916 = vmatprep.mubr.f32.mxu0 0.0
  %917 = vmatmul.mubr.f32.gmra.mxu0 %v778
  %v918 = vpop.f32.mrf.mxu0
  %v919 = vadd.f32 0.0, %v918
  %v920 = vpop.f32.mrf.mxu0
  %921 = vdwg.mxu0
  %v922 = vadd.f32 %v851, %v919
  %v923 = vmax.f32 %v922, 0.0
  %v925 = vsel %vm35, %v923, 0
  %927 = vmatprep.subr.mxu0 0.0
  %928 = vmatpush1.msra.mxu0 0.0
  %929 = vmatprep.subr.mxu0 0.0
  %930 = vmatpush1.msra.mxu0 0.0
  %931 = vmatprep.subr.mxu0 0.0
  %932 = vmatpush1.msra.mxu0 0.0
  %933 = vmatprep.subr.mxu0 0.0
  %934 = vmatpush1.msra.mxu0 0.0
  %935 = vmatprep.subr.mxu0 0.0
  %936 = vmatpush1.msra.mxu0 0.0
  %937 = vmatprep.subr.mxu0 0.0
  %938 = vmatpush1.msra.mxu0 0.0
  %939 = vmatprep.subr.mxu0 0.0
  %940 = vmatpush1.msra.mxu0 0.0
  %941 = vmatprep.subr.mxu0 0.0
  %942 = vmatpush1.msra.mxu0 0.0
  %943 = vmatprep.subr.mxu0 0.0
  %944 = vmatpush1.msra.mxu0 0.0
  %945 = vmatprep.subr.mxu0 0.0
  %946 = vmatpush1.msra.mxu0 0.0
  %947 = vmatprep.subr.mxu0 0.0
  %948 = vmatpush1.msra.mxu0 0.0
  %949 = vmatprep.subr.mxu0 0.0
  %950 = vmatpush1.msra.mxu0 0.0
  %951 = vmatprep.subr.mxu0 0.0
  %952 = vmatpush1.msra.mxu0 %v177
  %953 = vmatprep.subr.mxu0 0.0
  %954 = vmatpush1.msra.mxu0 %v176
  %955 = vmatprep.subr.mxu0 0.0
  %956 = vmatpush1.msra.mxu0 %v175
  %957 = vmatprep.subr.mxu0 0.0
  %958 = vmatpush1.msra.mxu0 %v174
  %959 = vmatprep.subr.mxu0 0.0
  %960 = vmatpush2.msra.mxu0 0.0
  %961 = vmatprep.subr.mxu0 0.0
  %962 = vmatpush2.msra.mxu0 0.0
  %963 = vmatprep.subr.mxu0 0.0
  %964 = vmatpush2.msra.mxu0 0.0
  %965 = vmatprep.subr.mxu0 0.0
  %966 = vmatpush2.msra.mxu0 0.0
  %967 = vmatprep.subr.mxu0 0.0
  %968 = vmatpush2.msra.mxu0 0.0
  %969 = vmatprep.subr.mxu0 0.0
  %970 = vmatpush2.msra.mxu0 0.0
  %971 = vmatprep.subr.mxu0 0.0
  %972 = vmatpush2.msra.mxu0 0.0
  %973 = vmatprep.subr.mxu0 0.0
  %974 = vmatpush2.msra.mxu0 0.0
  %975 = vmatprep.subr.mxu0 0.0
  %976 = vmatpush2.msra.mxu0 0.0
  %977 = vmatprep.subr.mxu0 0.0
  %978 = vmatpush2.msra.mxu0 0.0
  %979 = vmatprep.subr.mxu0 0.0
  %980 = vmatpush2.msra.mxu0 0.0
  %981 = vmatprep.subr.mxu0 0.0
  %982 = vmatpush2.msra.mxu0 0.0
  %983 = vmatprep.subr.mxu0 0.0
  %984 = vmatpush2.msra.mxu0 0.0
  %985 = vmatprep.subr.mxu0 0.0
  %986 = vmatpush2.msra.mxu0 0.0
  %987 = vmatprep.subr.mxu0 0.0
  %988 = vmatpush2.msra.mxu0 0.0
  %989 = vmatprep.subr.mxu0 0.0
  %990 = vmatpush2.msra.mxu0 0.0
  %991 = vmatprep.mubr.f32.mxu0 0.0
  %992 = vmatmul.mubr.f32.gmra.mxu0 %v925
  %v993 = vpop.f32.mrf.mxu0
  %v994 = vadd.f32 %v188, %v993
  %v995 = vpop.f32.mrf.mxu0
  %996 = vdwg.mxu0
  %997 = vst.msk [vmem:[#allocation3 + $0x28] sm:$0xff] %vm35, %v994
  %v998 = vld [vmem:[#allocation2 + $0x30] sm:$0xff]
  %999 = vmatprep.subr.mxu0 0.0
  %1000 = vmatpush1.msra.mxu0 0.0
  %1001 = vmatprep.subr.mxu0 0.0
  %1002 = vmatpush1.msra.mxu0 0.0
  %1003 = vmatprep.subr.mxu0 0.0
  %1004 = vmatpush1.msra.mxu0 0.0
  %1005 = vmatprep.subr.mxu0 0.0
  %1006 = vmatpush1.msra.mxu0 0.0
  %1007 = vmatprep.subr.mxu0 0.0
  %1008 = vmatpush1.msra.mxu0 0.0
  %1009 = vmatprep.subr.mxu0 0.0
  %1010 = vmatpush1.msra.mxu0 0.0
  %1011 = vmatprep.subr.mxu0 0.0
  %1012 = vmatpush1.msra.mxu0 0.0
  %1013 = vmatprep.subr.mxu0 0.0
  %1014 = vmatpush1.msra.mxu0 0.0
  %1015 = vmatprep.subr.mxu0 0.0
  %1016 = vmatpush1.msra.mxu0 0.0
  %1017 = vmatprep.subr.mxu0 0.0
  %1018 = vmatpush1.msra.mxu0 0.0
  %1019 = vmatprep.subr.mxu0 0.0
  %1020 = vmatpush1.msra.mxu0 0.0
  %1021 = vmatprep.subr.mxu0 0.0
  %1022 = vmatpush1.msra.mxu0 0.0
  %1023 = vmatprep.subr.mxu0 0.0
  %1024 = vmatpush1.msra.mxu0 %v21
  %1025 = vmatprep.subr.mxu0 0.0
  %1026 = vmatpush1.msra.mxu0 %v20
  %1027 = vmatprep.subr.mxu0 0.0
  %1028 = vmatpush1.msra.mxu0 %v19
  %1029 = vmatprep.subr.mxu0 0.0
  %1030 = vmatpush1.msra.mxu0 %v18
  %1031 = vmatprep.subr.mxu0 0.0
  %1032 = vmatpush2.msra.mxu0 0.0
  %1033 = vmatprep.subr.mxu0 0.0
  %1034 = vmatpush2.msra.mxu0 0.0
  %1035 = vmatprep.subr.mxu0 0.0
  %1036 = vmatpush2.msra.mxu0 0.0
  %1037 = vmatprep.subr.mxu0 0.0
  %1038 = vmatpush2.msra.mxu0 0.0
  %1039 = vmatprep.subr.mxu0 0.0
  %1040 = vmatpush2.msra.mxu0 0.0
  %1041 = vmatprep.subr.mxu0 0.0
  %1042 = vmatpush2.msra.mxu0 0.0
  %1043 = vmatprep.subr.mxu0 0.0
  %1044 = vmatpush2.msra.mxu0 0.0
  %1045 = vmatprep.subr.mxu0 0.0
  %1046 = vmatpush2.msra.mxu0 0.0
  %1047 = vmatprep.subr.mxu0 0.0
  %1048 = vmatpush2.msra.mxu0 0.0
  %1049 = vmatprep.subr.mxu0 0.0
  %1050 = vmatpush2.msra.mxu0 0.0
  %1051 = vmatprep.subr.mxu0 0.0
  %1052 = vmatpush2.msra.mxu0 0.0
  %1053 = vmatprep.subr.mxu0 0.0
  %1054 = vmatpush2.msra.mxu0 0.0
  %1055 = vmatprep.subr.mxu0 0.0
  %1056 = vmatpush2.msra.mxu0 0.0
  %1057 = vmatprep.subr.mxu0 0.0
  %1058 = vmatpush2.msra.mxu0 0.0
  %1059 = vmatprep.subr.mxu0 0.0
  %1060 = vmatpush2.msra.mxu0 0.0
  %1061 = vmatprep.subr.mxu0 0.0
  %1062 = vmatpush2.msra.mxu0 0.0
  %1063 = vmatprep.mubr.f32.mxu0 0.0
  %1064 = vmatmul.mubr.f32.gmra.mxu0 %v925
  %v1065 = vpop.f32.mrf.mxu0
  %v1066 = vadd.f32 0.0, %v1065
  %v1067 = vpop.f32.mrf.mxu0
  %1068 = vdwg.mxu0
  %v1069 = vadd.f32 %v998, %v1066
  %v1070 = vmax.f32 %v1069, 0.0
  %v1072 = vsel %vm35, %v1070, 0
  %1074 = vmatprep.subr.mxu0 0.0
  %1075 = vmatpush1.msra.mxu0 0.0
  %1076 = vmatprep.subr.mxu0 0.0
  %1077 = vmatpush1.msra.mxu0 0.0
  %1078 = vmatprep.subr.mxu0 0.0
  %1079 = vmatpush1.msra.mxu0 0.0
  %1080 = vmatprep.subr.mxu0 0.0
  %1081 = vmatpush1.msra.mxu0 0.0
  %1082 = vmatprep.subr.mxu0 0.0
  %1083 = vmatpush1.msra.mxu0 0.0
  %1084 = vmatprep.subr.mxu0 0.0
  %1085 = vmatpush1.msra.mxu0 0.0
  %1086 = vmatprep.subr.mxu0 0.0
  %1087 = vmatpush1.msra.mxu0 0.0
  %1088 = vmatprep.subr.mxu0 0.0
  %1089 = vmatpush1.msra.mxu0 0.0
  %1090 = vmatprep.subr.mxu0 0.0
  %1091 = vmatpush1.msra.mxu0 0.0
  %1092 = vmatprep.subr.mxu0 0.0
  %1093 = vmatpush1.msra.mxu0 0.0
  %1094 = vmatprep.subr.mxu0 0.0
  %1095 = vmatpush1.msra.mxu0 0.0
  %1096 = vmatprep.subr.mxu0 0.0
  %1097 = vmatpush1.msra.mxu0 0.0
  %1098 = vmatprep.subr.mxu0 0.0
  %1099 = vmatpush1.msra.mxu0 %v177
  %1100 = vmatprep.subr.mxu0 0.0
  %1101 = vmatpush1.msra.mxu0 %v176
  %1102 = vmatprep.subr.mxu0 0.0
  %1103 = vmatpush1.msra.mxu0 %v175
  %1104 = vmatprep.subr.mxu0 0.0
  %1105 = vmatpush1.msra.mxu0 %v174
  %1106 = vmatprep.subr.mxu0 0.0
  %1107 = vmatpush2.msra.mxu0 0.0
  %1108 = vmatprep.subr.mxu0 0.0
  %1109 = vmatpush2.msra.mxu0 0.0
  %1110 = vmatprep.subr.mxu0 0.0
  %1111 = vmatpush2.msra.mxu0 0.0
  %1112 = vmatprep.subr.mxu0 0.0
  %1113 = vmatpush2.msra.mxu0 0.0
  %1114 = vmatprep.subr.mxu0 0.0
  %1115 = vmatpush2.msra.mxu0 0.0
  %1116 = vmatprep.subr.mxu0 0.0
  %1117 = vmatpush2.msra.mxu0 0.0
  %1118 = vmatprep.subr.mxu0 0.0
  %1119 = vmatpush2.msra.mxu0 0.0
  %1120 = vmatprep.subr.mxu0 0.0
  %1121 = vmatpush2.msra.mxu0 0.0
  %1122 = vmatprep.subr.mxu0 0.0
  %1123 = vmatpush2.msra.mxu0 0.0
  %1124 = vmatprep.subr.mxu0 0.0
  %1125 = vmatpush2.msra.mxu0 0.0
  %1126 = vmatprep.subr.mxu0 0.0
  %1127 = vmatpush2.msra.mxu0 0.0
  %1128 = vmatprep.subr.mxu0 0.0
  %1129 = vmatpush2.msra.mxu0 0.0
  %1130 = vmatprep.subr.mxu0 0.0
  %1131 = vmatpush2.msra.mxu0 0.0
  %1132 = vmatprep.subr.mxu0 0.0
  %1133 = vmatpush2.msra.mxu0 0.0
  %1134 = vmatprep.subr.mxu0 0.0
  %1135 = vmatpush2.msra.mxu0 0.0
  %1136 = vmatprep.subr.mxu0 0.0
  %1137 = vmatpush2.msra.mxu0 0.0
  %1138 = vmatprep.mubr.f32.mxu0 0.0
  %1139 = vmatmul.mubr.f32.gmra.mxu0 %v1072
  %v1140 = vpop.f32.mrf.mxu0
  %v1141 = vadd.f32 %v188, %v1140
  %v1142 = vpop.f32.mrf.mxu0
  %1143 = vdwg.mxu0
  %1144 = vst.msk [vmem:[#allocation3 + $0x30] sm:$0xff] %vm35, %v1141
  %v1145 = vld [vmem:[#allocation2 + $0x38] sm:$0xff]
  %1146 = vmatprep.subr.mxu0 0.0
  %1147 = vmatpush1.msra.mxu0 0.0
  %1148 = vmatprep.subr.mxu0 0.0
  %1149 = vmatpush1.msra.mxu0 0.0
  %1150 = vmatprep.subr.mxu0 0.0
  %1151 = vmatpush1.msra.mxu0 0.0
  %1152 = vmatprep.subr.mxu0 0.0
  %1153 = vmatpush1.msra.mxu0 0.0
  %1154 = vmatprep.subr.mxu0 0.0
  %1155 = vmatpush1.msra.mxu0 0.0
  %1156 = vmatprep.subr.mxu0 0.0
  %1157 = vmatpush1.msra.mxu0 0.0
  %1158 = vmatprep.subr.mxu0 0.0
  %1159 = vmatpush1.msra.mxu0 0.0
  %1160 = vmatprep.subr.mxu0 0.0
  %1161 = vmatpush1.msra.mxu0 0.0
  %1162 = vmatprep.subr.mxu0 0.0
  %1163 = vmatpush1.msra.mxu0 0.0
  %1164 = vmatprep.subr.mxu0 0.0
  %1165 = vmatpush1.msra.mxu0 0.0
  %1166 = vmatprep.subr.mxu0 0.0
  %1167 = vmatpush1.msra.mxu0 0.0
  %1168 = vmatprep.subr.mxu0 0.0
  %1169 = vmatpush1.msra.mxu0 0.0
  %1170 = vmatprep.subr.mxu0 0.0
  %1171 = vmatpush1.msra.mxu0 %v21
  %1172 = vmatprep.subr.mxu0 0.0
  %1173 = vmatpush1.msra.mxu0 %v20
  %1174 = vmatprep.subr.mxu0 0.0
  %1175 = vmatpush1.msra.mxu0 %v19
  %1176 = vmatprep.subr.mxu0 0.0
  %1177 = vmatpush1.msra.mxu0 %v18
  %1178 = vmatprep.subr.mxu0 0.0
  %1179 = vmatpush2.msra.mxu0 0.0
  %1180 = vmatprep.subr.mxu0 0.0
  %1181 = vmatpush2.msra.mxu0 0.0
  %1182 = vmatprep.subr.mxu0 0.0
  %1183 = vmatpush2.msra.mxu0 0.0
  %1184 = vmatprep.subr.mxu0 0.0
  %1185 = vmatpush2.msra.mxu0 0.0
  %1186 = vmatprep.subr.mxu0 0.0
  %1187 = vmatpush2.msra.mxu0 0.0
  %1188 = vmatprep.subr.mxu0 0.0
  %1189 = vmatpush2.msra.mxu0 0.0
  %1190 = vmatprep.subr.mxu0 0.0
  %1191 = vmatpush2.msra.mxu0 0.0
  %1192 = vmatprep.subr.mxu0 0.0
  %1193 = vmatpush2.msra.mxu0 0.0
  %1194 = vmatprep.subr.mxu0 0.0
  %1195 = vmatpush2.msra.mxu0 0.0
  %1196 = vmatprep.subr.mxu0 0.0
  %1197 = vmatpush2.msra.mxu0 0.0
  %1198 = vmatprep.subr.mxu0 0.0
  %1199 = vmatpush2.msra.mxu0 0.0
  %1200 = vmatprep.subr.mxu0 0.0
  %1201 = vmatpush2.msra.mxu0 0.0
  %1202 = vmatprep.subr.mxu0 0.0
  %1203 = vmatpush2.msra.mxu0 0.0
  %1204 = vmatprep.subr.mxu0 0.0
  %1205 = vmatpush2.msra.mxu0 0.0
  %1206 = vmatprep.subr.mxu0 0.0
  %1207 = vmatpush2.msra.mxu0 0.0
  %1208 = vmatprep.subr.mxu0 0.0
  %1209 = vmatpush2.msra.mxu0 0.0
  %1210 = vmatprep.mubr.f32.mxu0 0.0
  %1211 = vmatmul.mubr.f32.gmra.mxu0 %v1072
  %v1212 = vpop.f32.mrf.mxu0
  %v1213 = vadd.f32 0.0, %v1212
  %v1214 = vpop.f32.mrf.mxu0
  %1215 = vdwg.mxu0
  %v1216 = vadd.f32 %v1145, %v1213
  %v1217 = vmax.f32 %v1216, 0.0
  %v1219 = vsel %vm35, %v1217, 0
  %1221 = vmatprep.subr.mxu0 0.0
  %1222 = vmatpush1.msra.mxu0 0.0
  %1223 = vmatprep.subr.mxu0 0.0
  %1224 = vmatpush1.msra.mxu0 0.0
  %1225 = vmatprep.subr.mxu0 0.0
  %1226 = vmatpush1.msra.mxu0 0.0
  %1227 = vmatprep.subr.mxu0 0.0
  %1228 = vmatpush1.msra.mxu0 0.0
  %1229 = vmatprep.subr.mxu0 0.0
  %1230 = vmatpush1.msra.mxu0 0.0
  %1231 = vmatprep.subr.mxu0 0.0
  %1232 = vmatpush1.msra.mxu0 0.0
  %1233 = vmatprep.subr.mxu0 0.0
  %1234 = vmatpush1.msra.mxu0 0.0
  %1235 = vmatprep.subr.mxu0 0.0
  %1236 = vmatpush1.msra.mxu0 0.0
  %1237 = vmatprep.subr.mxu0 0.0
  %1238 = vmatpush1.msra.mxu0 0.0
  %1239 = vmatprep.subr.mxu0 0.0
  %1240 = vmatpush1.msra.mxu0 0.0
  %1241 = vmatprep.subr.mxu0 0.0
  %1242 = vmatpush1.msra.mxu0 0.0
  %1243 = vmatprep.subr.mxu0 0.0
  %1244 = vmatpush1.msra.mxu0 0.0
  %1245 = vmatprep.subr.mxu0 0.0
  %1246 = vmatpush1.msra.mxu0 %v177
  %1247 = vmatprep.subr.mxu0 0.0
  %1248 = vmatpush1.msra.mxu0 %v176
  %1249 = vmatprep.subr.mxu0 0.0
  %1250 = vmatpush1.msra.mxu0 %v175
  %1251 = vmatprep.subr.mxu0 0.0
  %1252 = vmatpush1.msra.mxu0 %v174
  %1253 = vmatprep.subr.mxu0 0.0
  %1254 = vmatpush2.msra.mxu0 0.0
  %1255 = vmatprep.subr.mxu0 0.0
  %1256 = vmatpush2.msra.mxu0 0.0
  %1257 = vmatprep.subr.mxu0 0.0
  %1258 = vmatpush2.msra.mxu0 0.0
  %1259 = vmatprep.subr.mxu0 0.0
  %1260 = vmatpush2.msra.mxu0 0.0
  %1261 = vmatprep.subr.mxu0 0.0
  %1262 = vmatpush2.msra.mxu0 0.0
  %1263 = vmatprep.subr.mxu0 0.0
  %1264 = vmatpush2.msra.mxu0 0.0
  %1265 = vmatprep.subr.mxu0 0.0
  %1266 = vmatpush2.msra.mxu0 0.0
  %1267 = vmatprep.subr.mxu0 0.0
  %1268 = vmatpush2.msra.mxu0 0.0
  %1269 = vmatprep.subr.mxu0 0.0
  %1270 = vmatpush2.msra.mxu0 0.0
  %1271 = vmatprep.subr.mxu0 0.0
  %1272 = vmatpush2.msra.mxu0 0.0
  %1273 = vmatprep.subr.mxu0 0.0
  %1274 = vmatpush2.msra.mxu0 0.0
  %1275 = vmatprep.subr.mxu0 0.0
  %1276 = vmatpush2.msra.mxu0 0.0
  %1277 = vmatprep.subr.mxu0 0.0
  %1278 = vmatpush2.msra.mxu0 0.0
  %1279 = vmatprep.subr.mxu0 0.0
  %1280 = vmatpush2.msra.mxu0 0.0
  %1281 = vmatprep.subr.mxu0 0.0
  %1282 = vmatpush2.msra.mxu0 0.0
  %1283 = vmatprep.subr.mxu0 0.0
  %1284 = vmatpush2.msra.mxu0 0.0
  %1285 = vmatprep.mubr.f32.mxu0 0.0
  %1286 = vmatmul.mubr.f32.gmra.mxu0 %v1219
  %v1287 = vpop.f32.mrf.mxu0
  %v1288 = vadd.f32 %v188, %v1287
  %v1289 = vpop.f32.mrf.mxu0
  %1290 = vdwg.mxu0
  %1291 = vst.msk [vmem:[#allocation3 + $0x38] sm:$0xff] %vm35, %v1288
  %v1292 = vld [vmem:[#allocation3] sm:$0xff]
  %v1293 = vmax.f32 %v1292, 0.0
  %v1294 = vld [vmem:[#allocation3 + $0x8] sm:$0xff]
  %v1296 = vsel %vm35, %v1293, 0
  %1298 = vmatprep.subr.mxu0 0.0
  %1299 = vmatpush1.msra.mxu0 0.0
  %1300 = vmatprep.subr.mxu0 0.0
  %1301 = vmatpush1.msra.mxu0 0.0
  %1302 = vmatprep.subr.mxu0 0.0
  %1303 = vmatpush1.msra.mxu0 0.0
  %1304 = vmatprep.subr.mxu0 0.0
  %1305 = vmatpush1.msra.mxu0 0.0
  %1306 = vmatprep.subr.mxu0 0.0
  %1307 = vmatpush1.msra.mxu0 0.0
  %1308 = vmatprep.subr.mxu0 0.0
  %1309 = vmatpush1.msra.mxu0 0.0
  %1310 = vmatprep.subr.mxu0 0.0
  %1311 = vmatpush1.msra.mxu0 0.0
  %1312 = vmatprep.subr.mxu0 0.0
  %1313 = vmatpush1.msra.mxu0 0.0
  %1314 = vmatprep.subr.mxu0 0.0
  %1315 = vmatpush1.msra.mxu0 0.0
  %1316 = vmatprep.subr.mxu0 0.0
  %1317 = vmatpush1.msra.mxu0 0.0
  %1318 = vmatprep.subr.mxu0 0.0
  %1319 = vmatpush1.msra.mxu0 0.0
  %1320 = vmatprep.subr.mxu0 0.0
  %1321 = vmatpush1.msra.mxu0 0.0
  %1322 = vmatprep.subr.mxu0 0.0
  %1323 = vmatpush1.msra.mxu0 %v181
  %1324 = vmatprep.subr.mxu0 0.0
  %1325 = vmatpush1.msra.mxu0 %v180
  %1326 = vmatprep.subr.mxu0 0.0
  %1327 = vmatpush1.msra.mxu0 %v179
  %1328 = vmatprep.subr.mxu0 0.0
  %1329 = vmatpush1.msra.mxu0 %v178
  %1330 = vmatprep.subr.mxu0 0.0
  %1331 = vmatpush2.msra.mxu0 0.0
  %1332 = vmatprep.subr.mxu0 0.0
  %1333 = vmatpush2.msra.mxu0 0.0
  %1334 = vmatprep.subr.mxu0 0.0
  %1335 = vmatpush2.msra.mxu0 0.0
  %1336 = vmatprep.subr.mxu0 0.0
  %1337 = vmatpush2.msra.mxu0 0.0
  %1338 = vmatprep.subr.mxu0 0.0
  %1339 = vmatpush2.msra.mxu0 0.0
  %1340 = vmatprep.subr.mxu0 0.0
  %1341 = vmatpush2.msra.mxu0 0.0
  %1342 = vmatprep.subr.mxu0 0.0
  %1343 = vmatpush2.msra.mxu0 0.0
  %1344 = vmatprep.subr.mxu0 0.0
  %1345 = vmatpush2.msra.mxu0 0.0
  %1346 = vmatprep.subr.mxu0 0.0
  %1347 = vmatpush2.msra.mxu0 0.0
  %1348 = vmatprep.subr.mxu0 0.0
  %1349 = vmatpush2.msra.mxu0 0.0
  %1350 = vmatprep.subr.mxu0 0.0
  %1351 = vmatpush2.msra.mxu0 0.0
  %1352 = vmatprep.subr.mxu0 0.0
  %1353 = vmatpush2.msra.mxu0 0.0
  %1354 = vmatprep.subr.mxu0 0.0
  %1355 = vmatpush2.msra.mxu0 0.0
  %1356 = vmatprep.subr.mxu0 0.0
  %1357 = vmatpush2.msra.mxu0 0.0
  %1358 = vmatprep.subr.mxu0 0.0
  %1359 = vmatpush2.msra.mxu0 0.0
  %1360 = vmatprep.subr.mxu0 0.0
  %1361 = vmatpush2.msra.mxu0 0.0
  %1362 = vmatprep.mubr.f32.mxu0 0.0
  %1363 = vmatmul.mubr.f32.gmra.mxu0 %v1296
  %v1364 = vpop.f32.mrf.mxu0
  %v1365 = vadd.f32 0.0, %v1364
  %v1366 = vpop.f32.mrf.mxu0
  %1367 = vdwg.mxu0
  %v1368 = vadd.f32 %v1294, %v1365
  %v1369 = vmax.f32 %v1368, 0.0
  %v1370 = vld [vmem:[#allocation3 + $0x10] sm:$0xff]
  %v1372 = vsel %vm35, %v1369, 0
  %1374 = vmatprep.subr.mxu0 0.0
  %1375 = vmatpush1.msra.mxu0 0.0
  %1376 = vmatprep.subr.mxu0 0.0
  %1377 = vmatpush1.msra.mxu0 0.0
  %1378 = vmatprep.subr.mxu0 0.0
  %1379 = vmatpush1.msra.mxu0 0.0
  %1380 = vmatprep.subr.mxu0 0.0
  %1381 = vmatpush1.msra.mxu0 0.0
  %1382 = vmatprep.subr.mxu0 0.0
  %1383 = vmatpush1.msra.mxu0 0.0
  %1384 = vmatprep.subr.mxu0 0.0
  %1385 = vmatpush1.msra.mxu0 0.0
  %1386 = vmatprep.subr.mxu0 0.0
  %1387 = vmatpush1.msra.mxu0 0.0
  %1388 = vmatprep.subr.mxu0 0.0
  %1389 = vmatpush1.msra.mxu0 0.0
  %1390 = vmatprep.subr.mxu0 0.0
  %1391 = vmatpush1.msra.mxu0 0.0
  %1392 = vmatprep.subr.mxu0 0.0
  %1393 = vmatpush1.msra.mxu0 0.0
  %1394 = vmatprep.subr.mxu0 0.0
  %1395 = vmatpush1.msra.mxu0 0.0
  %1396 = vmatprep.subr.mxu0 0.0
  %1397 = vmatpush1.msra.mxu0 0.0
  %1398 = vmatprep.subr.mxu0 0.0
  %1399 = vmatpush1.msra.mxu0 %v181
  %1400 = vmatprep.subr.mxu0 0.0
  %1401 = vmatpush1.msra.mxu0 %v180
  %1402 = vmatprep.subr.mxu0 0.0
  %1403 = vmatpush1.msra.mxu0 %v179
  %1404 = vmatprep.subr.mxu0 0.0
  %1405 = vmatpush1.msra.mxu0 %v178
  %1406 = vmatprep.subr.mxu0 0.0
  %1407 = vmatpush2.msra.mxu0 0.0
  %1408 = vmatprep.subr.mxu0 0.0
  %1409 = vmatpush2.msra.mxu0 0.0
  %1410 = vmatprep.subr.mxu0 0.0
  %1411 = vmatpush2.msra.mxu0 0.0
  %1412 = vmatprep.subr.mxu0 0.0
  %1413 = vmatpush2.msra.mxu0 0.0
  %1414 = vmatprep.subr.mxu0 0.0
  %1415 = vmatpush2.msra.mxu0 0.0
  %1416 = vmatprep.subr.mxu0 0.0
  %1417 = vmatpush2.msra.mxu0 0.0
  %1418 = vmatprep.subr.mxu0 0.0
  %1419 = vmatpush2.msra.mxu0 0.0
  %1420 = vmatprep.subr.mxu0 0.0
  %1421 = vmatpush2.msra.mxu0 0.0
  %1422 = vmatprep.subr.mxu0 0.0
  %1423 = vmatpush2.msra.mxu0 0.0
  %1424 = vmatprep.subr.mxu0 0.0
  %1425 = vmatpush2.msra.mxu0 0.0
  %1426 = vmatprep.subr.mxu0 0.0
  %1427 = vmatpush2.msra.mxu0 0.0
  %1428 = vmatprep.subr.mxu0 0.0
  %1429 = vmatpush2.msra.mxu0 0.0
  %1430 = vmatprep.subr.mxu0 0.0
  %1431 = vmatpush2.msra.mxu0 0.0
  %1432 = vmatprep.subr.mxu0 0.0
  %1433 = vmatpush2.msra.mxu0 0.0
  %1434 = vmatprep.subr.mxu0 0.0
  %1435 = vmatpush2.msra.mxu0 0.0
  %1436 = vmatprep.subr.mxu0 0.0
  %1437 = vmatpush2.msra.mxu0 0.0
  %1438 = vmatprep.mubr.f32.mxu0 0.0
  %1439 = vmatmul.mubr.f32.gmra.mxu0 %v1372
  %v1440 = vpop.f32.mrf.mxu0
  %v1441 = vadd.f32 0.0, %v1440
  %v1442 = vpop.f32.mrf.mxu0
  %1443 = vdwg.mxu0
  %v1444 = vadd.f32 %v1370, %v1441
  %v1445 = vmax.f32 %v1444, 0.0
  %v1446 = vld [vmem:[#allocation3 + $0x18] sm:$0xff]
  %v1448 = vsel %vm35, %v1445, 0
  %1450 = vmatprep.subr.mxu0 0.0
  %1451 = vmatpush1.msra.mxu0 0.0
  %1452 = vmatprep.subr.mxu0 0.0
  %1453 = vmatpush1.msra.mxu0 0.0
  %1454 = vmatprep.subr.mxu0 0.0
  %1455 = vmatpush1.msra.mxu0 0.0
  %1456 = vmatprep.subr.mxu0 0.0
  %1457 = vmatpush1.msra.mxu0 0.0
  %1458 = vmatprep.subr.mxu0 0.0
  %1459 = vmatpush1.msra.mxu0 0.0
  %1460 = vmatprep.subr.mxu0 0.0
  %1461 = vmatpush1.msra.mxu0 0.0
  %1462 = vmatprep.subr.mxu0 0.0
  %1463 = vmatpush1.msra.mxu0 0.0
  %1464 = vmatprep.subr.mxu0 0.0
  %1465 = vmatpush1.msra.mxu0 0.0
  %1466 = vmatprep.subr.mxu0 0.0
  %1467 = vmatpush1.msra.mxu0 0.0
  %1468 = vmatprep.subr.mxu0 0.0
  %1469 = vmatpush1.msra.mxu0 0.0
  %1470 = vmatprep.subr.mxu0 0.0
  %1471 = vmatpush1.msra.mxu0 0.0
  %1472 = vmatprep.subr.mxu0 0.0
  %1473 = vmatpush1.msra.mxu0 0.0
  %1474 = vmatprep.subr.mxu0 0.0
  %1475 = vmatpush1.msra.mxu0 %v181
  %1476 = vmatprep.subr.mxu0 0.0
  %1477 = vmatpush1.msra.mxu0 %v180
  %1478 = vmatprep.subr.mxu0 0.0
  %1479 = vmatpush1.msra.mxu0 %v179
  %1480 = vmatprep.subr.mxu0 0.0
  %1481 = vmatpush1.msra.mxu0 %v178
  %1482 = vmatprep.subr.mxu0 0.0
  %1483 = vmatpush2.msra.mxu0 0.0
  %1484 = vmatprep.subr.mxu0 0.0
  %1485 = vmatpush2.msra.mxu0 0.0
  %1486 = vmatprep.subr.mxu0 0.0
  %1487 = vmatpush2.msra.mxu0 0.0
  %1488 = vmatprep.subr.mxu0 0.0
  %1489 = vmatpush2.msra.mxu0 0.0
  %1490 = vmatprep.subr.mxu0 0.0
  %1491 = vmatpush2.msra.mxu0 0.0
  %1492 = vmatprep.subr.mxu0 0.0
  %1493 = vmatpush2.msra.mxu0 0.0
  %1494 = vmatprep.subr.mxu0 0.0
  %1495 = vmatpush2.msra.mxu0 0.0
  %1496 = vmatprep.subr.mxu0 0.0
  %1497 = vmatpush2.msra.mxu0 0.0
  %1498 = vmatprep.subr.mxu0 0.0
  %1499 = vmatpush2.msra.mxu0 0.0
  %1500 = vmatprep.subr.mxu0 0.0
  %1501 = vmatpush2.msra.mxu0 0.0
  %1502 = vmatprep.subr.mxu0 0.0
  %1503 = vmatpush2.msra.mxu0 0.0
  %1504 = vmatprep.subr.mxu0 0.0
  %1505 = vmatpush2.msra.mxu0 0.0
  %1506 = vmatprep.subr.mxu0 0.0
  %1507 = vmatpush2.msra.mxu0 0.0
  %1508 = vmatprep.subr.mxu0 0.0
  %1509 = vmatpush2.msra.mxu0 0.0
  %1510 = vmatprep.subr.mxu0 0.0
  %1511 = vmatpush2.msra.mxu0 0.0
  %1512 = vmatprep.subr.mxu0 0.0
  %1513 = vmatpush2.msra.mxu0 0.0
  %1514 = vmatprep.mubr.f32.mxu0 0.0
  %1515 = vmatmul.mubr.f32.gmra.mxu0 %v1448
  %v1516 = vpop.f32.mrf.mxu0
  %v1517 = vadd.f32 0.0, %v1516
  %v1518 = vpop.f32.mrf.mxu0
  %1519 = vdwg.mxu0
  %v1520 = vadd.f32 %v1446, %v1517
  %v1521 = vmax.f32 %v1520, 0.0
  %v1522 = vld [vmem:[#allocation3 + $0x20] sm:$0xff]
  %v1524 = vsel %vm35, %v1521, 0
  %1526 = vmatprep.subr.mxu0 0.0
  %1527 = vmatpush1.msra.mxu0 0.0
  %1528 = vmatprep.subr.mxu0 0.0
  %1529 = vmatpush1.msra.mxu0 0.0
  %1530 = vmatprep.subr.mxu0 0.0
  %1531 = vmatpush1.msra.mxu0 0.0
  %1532 = vmatprep.subr.mxu0 0.0
  %1533 = vmatpush1.msra.mxu0 0.0
  %1534 = vmatprep.subr.mxu0 0.0
  %1535 = vmatpush1.msra.mxu0 0.0
  %1536 = vmatprep.subr.mxu0 0.0
  %1537 = vmatpush1.msra.mxu0 0.0
  %1538 = vmatprep.subr.mxu0 0.0
  %1539 = vmatpush1.msra.mxu0 0.0
  %1540 = vmatprep.subr.mxu0 0.0
  %1541 = vmatpush1.msra.mxu0 0.0
  %1542 = vmatprep.subr.mxu0 0.0
  %1543 = vmatpush1.msra.mxu0 0.0
  %1544 = vmatprep.subr.mxu0 0.0
  %1545 = vmatpush1.msra.mxu0 0.0
  %1546 = vmatprep.subr.mxu0 0.0
  %1547 = vmatpush1.msra.mxu0 0.0
  %1548 = vmatprep.subr.mxu0 0.0
  %1549 = vmatpush1.msra.mxu0 0.0
  %1550 = vmatprep.subr.mxu0 0.0
  %1551 = vmatpush1.msra.mxu0 %v181
  %1552 = vmatprep.subr.mxu0 0.0
  %1553 = vmatpush1.msra.mxu0 %v180
  %1554 = vmatprep.subr.mxu0 0.0
  %1555 = vmatpush1.msra.mxu0 %v179
  %1556 = vmatprep.subr.mxu0 0.0
  %1557 = vmatpush1.msra.mxu0 %v178
  %1558 = vmatprep.subr.mxu0 0.0
  %1559 = vmatpush2.msra.mxu0 0.0
  %1560 = vmatprep.subr.mxu0 0.0
  %1561 = vmatpush2.msra.mxu0 0.0
  %1562 = vmatprep.subr.mxu0 0.0
  %1563 = vmatpush2.msra.mxu0 0.0
  %1564 = vmatprep.subr.mxu0 0.0
  %1565 = vmatpush2.msra.mxu0 0.0
  %1566 = vmatprep.subr.mxu0 0.0
  %1567 = vmatpush2.msra.mxu0 0.0
  %1568 = vmatprep.subr.mxu0 0.0
  %1569 = vmatpush2.msra.mxu0 0.0
  %1570 = vmatprep.subr.mxu0 0.0
  %1571 = vmatpush2.msra.mxu0 0.0
  %1572 = vmatprep.subr.mxu0 0.0
  %1573 = vmatpush2.msra.mxu0 0.0
  %1574 = vmatprep.subr.mxu0 0.0
  %1575 = vmatpush2.msra.mxu0 0.0
  %1576 = vmatprep.subr.mxu0 0.0
  %1577 = vmatpush2.msra.mxu0 0.0
  %1578 = vmatprep.subr.mxu0 0.0
  %1579 = vmatpush2.msra.mxu0 0.0
  %1580 = vmatprep.subr.mxu0 0.0
  %1581 = vmatpush2.msra.mxu0 0.0
  %1582 = vmatprep.subr.mxu0 0.0
  %1583 = vmatpush2.msra.mxu0 0.0
  %1584 = vmatprep.subr.mxu0 0.0
  %1585 = vmatpush2.msra.mxu0 0.0
  %1586 = vmatprep.subr.mxu0 0.0
  %1587 = vmatpush2.msra.mxu0 0.0
  %1588 = vmatprep.subr.mxu0 0.0
  %1589 = vmatpush2.msra.mxu0 0.0
  %1590 = vmatprep.mubr.f32.mxu0 0.0
  %1591 = vmatmul.mubr.f32.gmra.mxu0 %v1524
  %v1592 = vpop.f32.mrf.mxu0
  %v1593 = vadd.f32 0.0, %v1592
  %v1594 = vpop.f32.mrf.mxu0
  %1595 = vdwg.mxu0
  %v1596 = vadd.f32 %v1522, %v1593
  %v1597 = vmax.f32 %v1596, 0.0
  %v1598 = vld [vmem:[#allocation3 + $0x28] sm:$0xff]
  %v1600 = vsel %vm35, %v1597, 0
  %1602 = vmatprep.subr.mxu0 0.0
  %1603 = vmatpush1.msra.mxu0 0.0
  %1604 = vmatprep.subr.mxu0 0.0
  %1605 = vmatpush1.msra.mxu0 0.0
  %1606 = vmatprep.subr.mxu0 0.0
  %1607 = vmatpush1.msra.mxu0 0.0
  %1608 = vmatprep.subr.mxu0 0.0
  %1609 = vmatpush1.msra.mxu0 0.0
  %1610 = vmatprep.subr.mxu0 0.0
  %1611 = vmatpush1.msra.mxu0 0.0
  %1612 = vmatprep.subr.mxu0 0.0
  %1613 = vmatpush1.msra.mxu0 0.0
  %1614 = vmatprep.subr.mxu0 0.0
  %1615 = vmatpush1.msra.mxu0 0.0
  %1616 = vmatprep.subr.mxu0 0.0
  %1617 = vmatpush1.msra.mxu0 0.0
  %1618 = vmatprep.subr.mxu0 0.0
  %1619 = vmatpush1.msra.mxu0 0.0
  %1620 = vmatprep.subr.mxu0 0.0
  %1621 = vmatpush1.msra.mxu0 0.0
  %1622 = vmatprep.subr.mxu0 0.0
  %1623 = vmatpush1.msra.mxu0 0.0
  %1624 = vmatprep.subr.mxu0 0.0
  %1625 = vmatpush1.msra.mxu0 0.0
  %1626 = vmatprep.subr.mxu0 0.0
  %1627 = vmatpush1.msra.mxu0 %v181
  %1628 = vmatprep.subr.mxu0 0.0
  %1629 = vmatpush1.msra.mxu0 %v180
  %1630 = vmatprep.subr.mxu0 0.0
  %1631 = vmatpush1.msra.mxu0 %v179
  %1632 = vmatprep.subr.mxu0 0.0
  %1633 = vmatpush1.msra.mxu0 %v178
  %1634 = vmatprep.subr.mxu0 0.0
  %1635 = vmatpush2.msra.mxu0 0.0
  %1636 = vmatprep.subr.mxu0 0.0
  %1637 = vmatpush2.msra.mxu0 0.0
  %1638 = vmatprep.subr.mxu0 0.0
  %1639 = vmatpush2.msra.mxu0 0.0
  %1640 = vmatprep.subr.mxu0 0.0
  %1641 = vmatpush2.msra.mxu0 0.0
  %1642 = vmatprep.subr.mxu0 0.0
  %1643 = vmatpush2.msra.mxu0 0.0
  %1644 = vmatprep.subr.mxu0 0.0
  %1645 = vmatpush2.msra.mxu0 0.0
  %1646 = vmatprep.subr.mxu0 0.0
  %1647 = vmatpush2.msra.mxu0 0.0
  %1648 = vmatprep.subr.mxu0 0.0
  %1649 = vmatpush2.msra.mxu0 0.0
  %1650 = vmatprep.subr.mxu0 0.0
  %1651 = vmatpush2.msra.mxu0 0.0
  %1652 = vmatprep.subr.mxu0 0.0
  %1653 = vmatpush2.msra.mxu0 0.0
  %1654 = vmatprep.subr.mxu0 0.0
  %1655 = vmatpush2.msra.mxu0 0.0
  %1656 = vmatprep.subr.mxu0 0.0
  %1657 = vmatpush2.msra.mxu0 0.0
  %1658 = vmatprep.subr.mxu0 0.0
  %1659 = vmatpush2.msra.mxu0 0.0
  %1660 = vmatprep.subr.mxu0 0.0
  %1661 = vmatpush2.msra.mxu0 0.0
  %1662 = vmatprep.subr.mxu0 0.0
  %1663 = vmatpush2.msra.mxu0 0.0
  %1664 = vmatprep.subr.mxu0 0.0
  %1665 = vmatpush2.msra.mxu0 0.0
  %1666 = vmatprep.mubr.f32.mxu0 0.0
  %1667 = vmatmul.mubr.f32.gmra.mxu0 %v1600
  %v1668 = vpop.f32.mrf.mxu0
  %v1669 = vadd.f32 0.0, %v1668
  %v1670 = vpop.f32.mrf.mxu0
  %1671 = vdwg.mxu0
  %v1672 = vadd.f32 %v1598, %v1669
  %v1673 = vmax.f32 %v1672, 0.0
  %v1674 = vld [vmem:[#allocation3 + $0x30] sm:$0xff]
  %v1676 = vsel %vm35, %v1673, 0
  %1678 = vmatprep.subr.mxu0 0.0
  %1679 = vmatpush1.msra.mxu0 0.0
  %1680 = vmatprep.subr.mxu0 0.0
  %1681 = vmatpush1.msra.mxu0 0.0
  %1682 = vmatprep.subr.mxu0 0.0
  %1683 = vmatpush1.msra.mxu0 0.0
  %1684 = vmatprep.subr.mxu0 0.0
  %1685 = vmatpush1.msra.mxu0 0.0
  %1686 = vmatprep.subr.mxu0 0.0
  %1687 = vmatpush1.msra.mxu0 0.0
  %1688 = vmatprep.subr.mxu0 0.0
  %1689 = vmatpush1.msra.mxu0 0.0
  %1690 = vmatprep.subr.mxu0 0.0
  %1691 = vmatpush1.msra.mxu0 0.0
  %1692 = vmatprep.subr.mxu0 0.0
  %1693 = vmatpush1.msra.mxu0 0.0
  %1694 = vmatprep.subr.mxu0 0.0
  %1695 = vmatpush1.msra.mxu0 0.0
  %1696 = vmatprep.subr.mxu0 0.0
  %1697 = vmatpush1.msra.mxu0 0.0
  %1698 = vmatprep.subr.mxu0 0.0
  %1699 = vmatpush1.msra.mxu0 0.0
  %1700 = vmatprep.subr.mxu0 0.0
  %1701 = vmatpush1.msra.mxu0 0.0
  %1702 = vmatprep.subr.mxu0 0.0
  %1703 = vmatpush1.msra.mxu0 %v181
  %1704 = vmatprep.subr.mxu0 0.0
  %1705 = vmatpush1.msra.mxu0 %v180
  %1706 = vmatprep.subr.mxu0 0.0
  %1707 = vmatpush1.msra.mxu0 %v179
  %1708 = vmatprep.subr.mxu0 0.0
  %1709 = vmatpush1.msra.mxu0 %v178
  %1710 = vmatprep.subr.mxu0 0.0
  %1711 = vmatpush2.msra.mxu0 0.0
  %1712 = vmatprep.subr.mxu0 0.0
  %1713 = vmatpush2.msra.mxu0 0.0
  %1714 = vmatprep.subr.mxu0 0.0
  %1715 = vmatpush2.msra.mxu0 0.0
  %1716 = vmatprep.subr.mxu0 0.0
  %1717 = vmatpush2.msra.mxu0 0.0
  %1718 = vmatprep.subr.mxu0 0.0
  %1719 = vmatpush2.msra.mxu0 0.0
  %1720 = vmatprep.subr.mxu0 0.0
  %1721 = vmatpush2.msra.mxu0 0.0
  %1722 = vmatprep.subr.mxu0 0.0
  %1723 = vmatpush2.msra.mxu0 0.0
  %1724 = vmatprep.subr.mxu0 0.0
  %1725 = vmatpush2.msra.mxu0 0.0
  %1726 = vmatprep.subr.mxu0 0.0
  %1727 = vmatpush2.msra.mxu0 0.0
  %1728 = vmatprep.subr.mxu0 0.0
  %1729 = vmatpush2.msra.mxu0 0.0
  %1730 = vmatprep.subr.mxu0 0.0
  %1731 = vmatpush2.msra.mxu0 0.0
  %1732 = vmatprep.subr.mxu0 0.0
  %1733 = vmatpush2.msra.mxu0 0.0
  %1734 = vmatprep.subr.mxu0 0.0
  %1735 = vmatpush2.msra.mxu0 0.0
  %1736 = vmatprep.subr.mxu0 0.0
  %1737 = vmatpush2.msra.mxu0 0.0
  %1738 = vmatprep.subr.mxu0 0.0
  %1739 = vmatpush2.msra.mxu0 0.0
  %1740 = vmatprep.subr.mxu0 0.0
  %1741 = vmatpush2.msra.mxu0 0.0
  %1742 = vmatprep.mubr.f32.mxu0 0.0
  %1743 = vmatmul.mubr.f32.gmra.mxu0 %v1676
  %v1744 = vpop.f32.mrf.mxu0
  %v1745 = vadd.f32 0.0, %v1744
  %v1746 = vpop.f32.mrf.mxu0
  %1747 = vdwg.mxu0
  %v1748 = vadd.f32 %v1674, %v1745
  %v1749 = vmax.f32 %v1748, 0.0
  %v1750 = vld [vmem:[#allocation3 + $0x38] sm:$0xff]
  %v1752 = vsel %vm35, %v1749, 0
  %1754 = vmatprep.subr.mxu0 0.0
  %1755 = vmatpush1.msra.mxu0 0.0
  %1756 = vmatprep.subr.mxu0 0.0
  %1757 = vmatpush1.msra.mxu0 0.0
  %1758 = vmatprep.subr.mxu0 0.0
  %1759 = vmatpush1.msra.mxu0 0.0
  %1760 = vmatprep.subr.mxu0 0.0
  %1761 = vmatpush1.msra.mxu0 0.0
  %1762 = vmatprep.subr.mxu0 0.0
  %1763 = vmatpush1.msra.mxu0 0.0
  %1764 = vmatprep.subr.mxu0 0.0
  %1765 = vmatpush1.msra.mxu0 0.0
  %1766 = vmatprep.subr.mxu0 0.0
  %1767 = vmatpush1.msra.mxu0 0.0
  %1768 = vmatprep.subr.mxu0 0.0
  %1769 = vmatpush1.msra.mxu0 0.0
  %1770 = vmatprep.subr.mxu0 0.0
  %1771 = vmatpush1.msra.mxu0 0.0
  %1772 = vmatprep.subr.mxu0 0.0
  %1773 = vmatpush1.msra.mxu0 0.0
  %1774 = vmatprep.subr.mxu0 0.0
  %1775 = vmatpush1.msra.mxu0 0.0
  %1776 = vmatprep.subr.mxu0 0.0
  %1777 = vmatpush1.msra.mxu0 0.0
  %1778 = vmatprep.subr.mxu0 0.0
  %1779 = vmatpush1.msra.mxu0 %v181
  %1780 = vmatprep.subr.mxu0 0.0
  %1781 = vmatpush1.msra.mxu0 %v180
  %1782 = vmatprep.subr.mxu0 0.0
  %1783 = vmatpush1.msra.mxu0 %v179
  %1784 = vmatprep.subr.mxu0 0.0
  %1785 = vmatpush1.msra.mxu0 %v178
  %1786 = vmatprep.subr.mxu0 0.0
  %1787 = vmatpush2.msra.mxu0 0.0
  %1788 = vmatprep.subr.mxu0 0.0
  %1789 = vmatpush2.msra.mxu0 0.0
  %1790 = vmatprep.subr.mxu0 0.0
  %1791 = vmatpush2.msra.mxu0 0.0
  %1792 = vmatprep.subr.mxu0 0.0
  %1793 = vmatpush2.msra.mxu0 0.0
  %1794 = vmatprep.subr.mxu0 0.0
  %1795 = vmatpush2.msra.mxu0 0.0
  %1796 = vmatprep.subr.mxu0 0.0
  %1797 = vmatpush2.msra.mxu0 0.0
  %1798 = vmatprep.subr.mxu0 0.0
  %1799 = vmatpush2.msra.mxu0 0.0
  %1800 = vmatprep.subr.mxu0 0.0
  %1801 = vmatpush2.msra.mxu0 0.0
  %1802 = vmatprep.subr.mxu0 0.0
  %1803 = vmatpush2.msra.mxu0 0.0
  %1804 = vmatprep.subr.mxu0 0.0
  %1805 = vmatpush2.msra.mxu0 0.0
  %1806 = vmatprep.subr.mxu0 0.0
  %1807 = vmatpush2.msra.mxu0 0.0
  %1808 = vmatprep.subr.mxu0 0.0
  %1809 = vmatpush2.msra.mxu0 0.0
  %1810 = vmatprep.subr.mxu0 0.0
  %1811 = vmatpush2.msra.mxu0 0.0
  %1812 = vmatprep.subr.mxu0 0.0
  %1813 = vmatpush2.msra.mxu0 0.0
  %1814 = vmatprep.subr.mxu0 0.0
  %1815 = vmatpush2.msra.mxu0 0.0
  %1816 = vmatprep.subr.mxu0 0.0
  %1817 = vmatpush2.msra.mxu0 0.0
  %1818 = vmatprep.mubr.f32.mxu0 0.0
  %1819 = vmatmul.mubr.f32.gmra.mxu0 %v1752
  %v1820 = vpop.f32.mrf.mxu0
  %v1821 = vadd.f32 0.0, %v1820
  %v1822 = vpop.f32.mrf.mxu0
  %1823 = vdwg.mxu0
  %v1824 = vadd.f32 %v1750, %v1821
  %v1825 = vmax.f32 %v1824, 0.0
  %v1826 = vld [vmem:[%s2] sm:$0xff]
  %v1827 = vld [vmem:[%s2 + $0x8] sm:$0xff]
  %v1828 = vld [vmem:[%s2 + $0x10] sm:$0xff]
  %v1829 = vld [vmem:[%s2 + $0x18] sm:$0xff]
  %v1830 = vld [vmem:[%s2 + $0x20] sm:$0x1]
  %v1831 = vlaneseq
  %v1832 = vshrl.u32 %v1831, 7
  %v1833 = vsub.s32 0, %v1832
  %v1834 = vrot.slane %v1830, %v1833
  %v1836 = vsel %vm35, %v1825, 0
  %1838 = vmatprep.subr.mxu0 0.0
  %1839 = vmatpush1.msra.mxu0 0.0
  %1840 = vmatprep.subr.mxu0 0.0
  %1841 = vmatpush1.msra.mxu0 0.0
  %1842 = vmatprep.subr.mxu0 0.0
  %1843 = vmatpush1.msra.mxu0 0.0
  %1844 = vmatprep.subr.mxu0 0.0
  %1845 = vmatpush1.msra.mxu0 0.0
  %1846 = vmatprep.subr.mxu0 0.0
  %1847 = vmatpush1.msra.mxu0 0.0
  %1848 = vmatprep.subr.mxu0 0.0
  %1849 = vmatpush1.msra.mxu0 0.0
  %1850 = vmatprep.subr.mxu0 0.0
  %1851 = vmatpush1.msra.mxu0 0.0
  %1852 = vmatprep.subr.mxu0 0.0
  %1853 = vmatpush1.msra.mxu0 0.0
  %1854 = vmatprep.subr.mxu0 0.0
  %1855 = vmatpush1.msra.mxu0 0.0
  %1856 = vmatprep.subr.mxu0 0.0
  %1857 = vmatpush1.msra.mxu0 0.0
  %1858 = vmatprep.subr.mxu0 0.0
  %1859 = vmatpush1.msra.mxu0 0.0
  %1860 = vmatprep.subr.mxu0 0.0
  %1861 = vmatpush1.msra.mxu0 0.0
  %1862 = vmatprep.subr.mxu0 0.0
  %1863 = vmatpush1.msra.mxu0 %v1829
  %1864 = vmatprep.subr.mxu0 0.0
  %1865 = vmatpush1.msra.mxu0 %v1828
  %1866 = vmatprep.subr.mxu0 0.0
  %1867 = vmatpush1.msra.mxu0 %v1827
  %1868 = vmatprep.subr.mxu0 0.0
  %1869 = vmatpush1.msra.mxu0 %v1826
  %1870 = vmatprep.subr.mxu0 0.0
  %1871 = vmatpush2.msra.mxu0 0.0
  %1872 = vmatprep.subr.mxu0 0.0
  %1873 = vmatpush2.msra.mxu0 0.0
  %1874 = vmatprep.subr.mxu0 0.0
  %1875 = vmatpush2.msra.mxu0 0.0
  %1876 = vmatprep.subr.mxu0 0.0
  %1877 = vmatpush2.msra.mxu0 0.0
  %1878 = vmatprep.subr.mxu0 0.0
  %1879 = vmatpush2.msra.mxu0 0.0
  %1880 = vmatprep.subr.mxu0 0.0
  %1881 = vmatpush2.msra.mxu0 0.0
  %1882 = vmatprep.subr.mxu0 0.0
  %1883 = vmatpush2.msra.mxu0 0.0
  %1884 = vmatprep.subr.mxu0 0.0
  %1885 = vmatpush2.msra.mxu0 0.0
  %1886 = vmatprep.subr.mxu0 0.0
  %1887 = vmatpush2.msra.mxu0 0.0
  %1888 = vmatprep.subr.mxu0 0.0
  %1889 = vmatpush2.msra.mxu0 0.0
  %1890 = vmatprep.subr.mxu0 0.0
  %1891 = vmatpush2.msra.mxu0 0.0
  %1892 = vmatprep.subr.mxu0 0.0
  %1893 = vmatpush2.msra.mxu0 0.0
  %1894 = vmatprep.subr.mxu0 0.0
  %1895 = vmatpush2.msra.mxu0 0.0
  %1896 = vmatprep.subr.mxu0 0.0
  %1897 = vmatpush2.msra.mxu0 0.0
  %1898 = vmatprep.subr.mxu0 0.0
  %1899 = vmatpush2.msra.mxu0 0.0
  %1900 = vmatprep.subr.mxu0 0.0
  %1901 = vmatpush2.msra.mxu0 0.0
  %1902 = vmatprep.mubr.f32.mxu0 0.0
  %1903 = vmatmul.mubr.f32.gmra.mxu0 %v1836
  %v1904 = vpop.f32.mrf.mxu0
  %v1905 = vadd.f32 %v1834, %v1904
  %v1906 = vpop.f32.mrf.mxu0
  %1907 = vdwg.mxu0
  %vm1908 = vcmask 31744
  %1909 = vst.msk [vmem:[%s3] sm:$0xff] %vm1908, %v1905
  // Predicated region
  $region14: #{tpu_custom_call.1} parent=0 // pred_check
    _
  $region15: #{tpu_custom_call.1} parent=0 // pred_check_branch
    %1911 = sbr.rel (0) target = $region17
  $region16: #{tpu_custom_call.1} parent=0 // pred_region
    _
  $region17: #{tpu_custom_call.1} parent=0 // pred_fallthru
    _
  // Predicated region
  $region18: #{tpu_custom_call.1} parent=0 // pred_check
    _
  $region19: #{tpu_custom_call.1} parent=0 // pred_check_branch
    %1913 = sbr.rel (0) target = $region21
  $region20: #{tpu_custom_call.1} parent=0 // pred_region
    _
  $region21: #{tpu_custom_call.1} parent=0 // pred_fallthru
    _

</llo_original>
